<compile_context>
chip_gen: v5e
topology: v5e:2x2
jax: 0.10.0
libtpu: 0.0.40
codegen_flags: <defaults>
</compile_context>

<pallas_src>
import functools

import jax
import jax.numpy as jnp
from jax.experimental import pallas as pl
from jax.experimental.pallas import tpu as pltpu

EPS = 1e-5      # nn.LayerNorm default eps
LANE = 128      # TPU lane width


def _round_up(x, m):
    return (x + m - 1) // m * m


# ----------------------------- in-kernel helpers -----------------------------
def _layernorm(x, g, b, inv_count):
    # Padded lanes of `x` are exactly zero, so plain sums over the padded axis
    # equal sums over the real features; divide by the true feature count.
    mean = jnp.sum(x, axis=-1, keepdims=True) * inv_count
    mean_sq = jnp.sum(x * x, axis=-1, keepdims=True) * inv_count
    var = mean_sq - mean * mean            # biased variance, like torch
    return (x - mean) * jax.lax.rsqrt(var + EPS) * g + b


def _gelu_exact(x):
    # torch.nn.GELU() default is the exact erf formulation
    return 0.5 * x * (1.0 + jax.lax.erf(x * 0.7071067811865476))


# ------------------------------ the fused kernel ------------------------------
def fused_vit_kernel(x_ref,                                        # patches (N, P)
                     e_ln1_g, e_ln1_b, e_w, e_b, e_ln2_g, e_ln2_b,  # patch embed
                     a_ln_g, a_ln_b, wq_ref, wk_ref, wv_ref, wo_ref,  # attention
                     f_ln_g, f_ln_b, w1_ref, b1_ref, w2_ref, b2_ref,  # feed-forward
                     fin_g, fin_b,                                  # final LN
                     o_ref, x_acc,                                  # out + scratch
                     *, patch_dim, dim):
    l = pl.program_id(1)
    n_tok = x_ref.shape[0]
    heads = wq_ref.shape[0]
    d_pad = x_acc.shape[-1]
    inv_p = jnp.float32(1.0 / patch_dim)
    inv_d = jnp.float32(1.0 / dim)
    bf16 = jnp.bfloat16
    f32 = jnp.float32

    # ---- patch embedding: only on the first layer step of each batch ----
    @pl.when(l == 0)
    def _():
        pt = x_ref[...]
        h = _layernorm(pt, e_ln1_g[...], e_ln1_b[...], inv_p)
        h = jnp.dot(h.astype(bf16), e_w[...], preferred_element_type=f32) + e_b[...]
        x_acc[...] = _layernorm(h, e_ln2_g[...], e_ln2_b[...], inv_d)

    # ---- attention block:  x = x + Attn(LN(x)) ----
    x = x_acc[...]
    h16 = _layernorm(x, a_ln_g[...], a_ln_b[...], inv_d).astype(bf16)
    hb = jnp.broadcast_to(h16[None, :, :], (heads, n_tok, d_pad))
    proj_dims = (((2,), (1,)), ((0,), (0,)))        # contract feature, batch heads
    q = jax.lax.dot_general(hb, wq_ref[...], proj_dims,
                            preferred_element_type=f32)            # (h, n, dh)
    k = jax.lax.dot_general(hb, wk_ref[...], proj_dims,
                            preferred_element_type=f32)            # (h, n, dh)
    v = jax.lax.dot_general(hb, wv_ref[...], proj_dims,
                            preferred_element_type=f32)            # (h, n, dh)
    dots = jax.lax.dot_general(q.astype(bf16), k.astype(bf16),
                               (((2,), (2,)), ((0,), (0,))),
                               preferred_element_type=f32)         # (h, n, n)
    dots = dots - jnp.max(dots, axis=-1, keepdims=True)
    p = jnp.exp(dots)
    attn = p * pl.reciprocal(jnp.sum(p, axis=-1, keepdims=True), approx=True)
    ctx = jax.lax.dot_general(attn.astype(bf16), v.astype(bf16),
                              (((2,), (1,)), ((0,), (0,))),
                              preferred_element_type=f32)          # (h, n, dh)
    proj = jax.lax.dot_general(ctx.astype(bf16), wo_ref[...],
                               (((2,), (1,)), ((0,), (0,))),
                               preferred_element_type=f32)         # (h, n, D)
    x = x + jnp.sum(proj, axis=0)

    # ---- feed-forward block:  x = x + FF(LN(x)) ----
    h16 = _layernorm(x, f_ln_g[...], f_ln_b[...], inv_d).astype(bf16)
    hh = jnp.dot(h16, w1_ref[...], preferred_element_type=f32) + b1_ref[...]
    hh = _gelu_exact(hh)
    hh = jnp.dot(hh.astype(bf16), w2_ref[...], preferred_element_type=f32) + b2_ref[...]
    x = x + hh
    x_acc[...] = x

    # ---- final LayerNorm after the last layer ----
    @pl.when(l == pl.num_programs(1) - 1)
    def _():
        o_ref[...] = _layernorm(x, fin_g[...], fin_b[...], inv_d)


# -------------------------------- pallas glue ----------------------------------
def _const_spec(shape):
    nd = len(shape)
    return pl.BlockSpec(shape, lambda b, l, nd=nd: (0,) * nd)


def _layer_spec(shape):     # `shape` excludes the stacked depth axis
    nd = len(shape)
    return pl.BlockSpec((None,) + shape, lambda b, l, nd=nd: (l,) + (0,) * nd)


def simple_vit_forward(img, packed, *, patch_size, dim, patch_dim):
    B, C, H, W = img.shape
    ps = patch_size
    # einops Rearrange 'b c (h p1) (w p2) -> b (h w) (p1 p2 c)' — plain-JAX glue.
    # (Could be folded into the kernel's input index_map; kept outside for clarity.)
    x = img.reshape(B, C, H // ps, ps, W // ps, ps)
    x = x.transpose(0, 2, 4, 3, 5, 1).reshape(B, (H // ps) * (W // ps), ps * ps * C)
    N = x.shape[1]

    depth, heads, D_pad, dim_head = packed["wq"].shape
    P_pad = packed["emb_ln1_g"].shape[-1]
    M_pad = packed["b1"].shape[-1]
    x = jnp.pad(x, ((0, 0), (0, 0), (0, P_pad - patch_dim)))

    kernel = functools.partial(fused_vit_kernel, patch_dim=patch_dim, dim=dim)

    in_specs = [
        pl.BlockSpec((None, N, P_pad), lambda b, l: (b, 0, 0)),       # patches
        _const_spec((1, P_pad)), _const_spec((1, P_pad)),             # emb ln1 g/b
        _const_spec((P_pad, D_pad)), _const_spec((1, D_pad)),         # emb w, b
        _const_spec((1, D_pad)), _const_spec((1, D_pad)),             # emb ln2 g/b
        _layer_spec((1, D_pad)), _layer_spec((1, D_pad)),             # attn ln g/b
        _layer_spec((heads, D_pad, dim_head)),                        # wq (scale folded)
        _layer_spec((heads, D_pad, dim_head)),                        # wk
        _layer_spec((heads, D_pad, dim_head)),                        # wv
        _layer_spec((heads, dim_head, D_pad)),                        # wout
        _layer_spec((1, D_pad)), _layer_spec((1, D_pad)),             # ff ln g/b
        _layer_spec((D_pad, M_pad)), _layer_spec((1, M_pad)),         # w1, b1
        _layer_spec((M_pad, D_pad)), _layer_spec((1, D_pad)),         # w2, b2
        _const_spec((1, D_pad)), _const_spec((1, D_pad)),             # final ln g/b
    ]

    out = pl.pallas_call(
        kernel,
        out_shape=jax.ShapeDtypeStruct((B, N, D_pad), jnp.float32),
        grid=(B, depth),
        in_specs=in_specs,
        out_specs=pl.BlockSpec((None, N, D_pad), lambda b, l: (b, 0, 0)),
        scratch_shapes=[pltpu.VMEM((N, D_pad), jnp.float32)],
        compiler_params=pltpu.CompilerParams(
            dimension_semantics=("parallel", "arbitrary"),
            vmem_limit_bytes=56 * 1024 * 1024),
    )(x,
      packed["emb_ln1_g"], packed["emb_ln1_b"], packed["emb_w"], packed["emb_b"],
      packed["emb_ln2_g"], packed["emb_ln2_b"],
      packed["attn_ln_g"], packed["attn_ln_b"],
      packed["wq"], packed["wk"], packed["wv"], packed["wout"],
      packed["ff_ln_g"], packed["ff_ln_b"],
      packed["w1"], packed["b1"], packed["w2"], packed["b2"],
      packed["final_ln_g"], packed["final_ln_b"])
    return out[:, :, :dim]


# ------------------------------ parameter handling -----------------------------
def init_params(key, patch_dim, dim, depth, heads, dim_head, mlp_dim):
    """Logical (PyTorch-shaped) f32 parameters."""
    inner = heads * dim_head
    keys = jax.random.split(key, depth + 1)

    def w(k, shape):
        return jax.random.normal(k, shape, jnp.float32) * 0.02

    params = {
        "emb_ln1_g": jnp.ones((patch_dim,), jnp.float32),
        "emb_ln1_b": jnp.zeros((patch_dim,), jnp.float32),
        "emb_w": w(keys[0], (patch_dim, dim)),
        "emb_b": jnp.zeros((dim,), jnp.float32),
        "emb_ln2_g": jnp.ones((dim,), jnp.float32),
        "emb_ln2_b": jnp.zeros((dim,), jnp.float32),
        "final_ln_g": jnp.ones((dim,), jnp.float32),
        "final_ln_b": jnp.zeros((dim,), jnp.float32),
        "layers": [],
    }
    for i in range(depth):
        k1, k2, k3, k4 = jax.random.split(keys[1 + i], 4)
        params["layers"].append(dict(
            attn_ln_g=jnp.ones((dim,), jnp.float32),
            attn_ln_b=jnp.zeros((dim,), jnp.float32),
            wqkv=w(k1, (dim, 3 * inner)),       # to_qkv (bias=False)
            wout=w(k2, (inner, dim)),           # to_out (bias=False)
            ff_ln_g=jnp.ones((dim,), jnp.float32),
            ff_ln_b=jnp.zeros((dim,), jnp.float32),
            w1=w(k3, (dim, mlp_dim)), b1=jnp.zeros((mlp_dim,), jnp.float32),
            w2=w(k4, (mlp_dim, dim)), b2=jnp.zeros((dim,), jnp.float32)))
    return params


def prepare_params(params, *, heads, dim_head):
    """Pad to 128-lane multiples, stack per-layer weights over a depth axis,
    cast matmul weights to bf16 and fold the attention scale into wq."""
    patch_dim, dim = params["emb_w"].shape
    mlp_dim = params["layers"][0]["w1"].shape[1]
    inner = heads * dim_head
    P = _round_up(patch_dim, LANE)
    D = _round_up(dim, LANE)
    M = _round_up(mlp_dim, LANE)
    scale = dim_head ** -0.5

    def vec(v, n):
        return jnp.pad(v, (0, n - v.shape[0])).reshape(1, n).astype(jnp.float32)

    def mat(m, r, c):
        return jnp.pad(m, ((0, r - m.shape[0]), (0, c - m.shape[1]))).astype(jnp.bfloat16)

    def qkv_head_major(w):
        # (dim, heads*dh) -> (heads, D, dh), zero-padded along the dim axis.
        w = w.reshape(dim, heads, dim_head).transpose(1, 0, 2)
        return jnp.pad(w, ((0, 0), (0, D - dim), (0, 0))).astype(jnp.bfloat16)

    def stack(fn):
        return jnp.stack([fn(L) for L in params["layers"]])

    return dict(
        emb_ln1_g=vec(params["emb_ln1_g"], P), emb_ln1_b=vec(params["emb_ln1_b"], P),
        emb_w=mat(params["emb_w"], P, D), emb_b=vec(params["emb_b"], D),
        emb_ln2_g=vec(params["emb_ln2_g"], D), emb_ln2_b=vec(params["emb_ln2_b"], D),
        final_ln_g=vec(params["final_ln_g"], D), final_ln_b=vec(params["final_ln_b"], D),
        attn_ln_g=stack(lambda L: vec(L["attn_ln_g"], D)),
        attn_ln_b=stack(lambda L: vec(L["attn_ln_b"], D)),
        wq=stack(lambda L: qkv_head_major(L["wqkv"][:, :inner] * scale)),
        wk=stack(lambda L: qkv_head_major(L["wqkv"][:, inner:2 * inner])),
        wv=stack(lambda L: qkv_head_major(L["wqkv"][:, 2 * inner:])),
        wout=stack(lambda L: jnp.pad(
            L["wout"].reshape(heads, dim_head, dim),
            ((0, 0), (0, 0), (0, D - dim))).astype(jnp.bfloat16)),
        ff_ln_g=stack(lambda L: vec(L["ff_ln_g"], D)),
        ff_ln_b=stack(lambda L: vec(L["ff_ln_b"], D)),
        w1=stack(lambda L: mat(L["w1"], D, M)),
        b1=stack(lambda L: vec(L["b1"], M)),
        w2=stack(lambda L: mat(L["w2"], M, D)),
        b2=stack(lambda L: vec(L["b2"], D)),
    )


# -------------------------- plain-JAX reference (f32) ---------------------------
def _reference_forward(img, params, *, patch_size, heads, dim_head):
    B, C, H, W = img.shape
    ps = patch_size
    x = img.reshape(B, C, H // ps, ps, W // ps, ps)
    x = x.transpose(0, 2, 4, 3, 5, 1).reshape(B, -1, ps * ps * C)

    def ln(t, g, b):
        mu = jnp.mean(t, -1, keepdims=True)
        var = jnp.mean((t - mu) ** 2, -1, keepdims=True)
        return (t - mu) / jnp.sqrt(var + EPS) * g + b

    x = ln(x, params["emb_ln1_g"], params["emb_ln1_b"])
    x = x @ params["emb_w"] + params["emb_b"]
    x = ln(x, params["emb_ln2_g"], params["emb_ln2_b"])
    inner = heads * dim_head
    scale = dim_head ** -0.5
    for L in params["layers"]:
        h = ln(x, L["attn_ln_g"], L["attn_ln_b"])
        q, k, v = jnp.split(h @ L["wqkv"], 3, axis=-1)
        def hf(t):
            return t.reshape(t.shape[0], t.shape[1], heads, dim_head).transpose(0, 2, 1, 3)
        q, k, v = hf(q), hf(k), hf(v)
        dots = jnp.einsum("bhnd,bhmd->bhnm", q, k) * scale
        attn = jax.nn.softmax(dots, axis=-1)
        o = jnp.einsum("bhnm,bhmd->bhnd", attn, v)
        o = o.transpose(0, 2, 1, 3).reshape(x.shape[0], -1, inner)
        x = x + o @ L["wout"]
        h = ln(x, L["ff_ln_g"], L["ff_ln_b"])
        h = h @ L["w1"] + L["b1"]
        h = 0.5 * h * (1.0 + jax.lax.erf(h * 0.7071067811865476))
        x = x + h @ L["w2"] + L["b2"]
    return ln(x, params["final_ln_g"], params["final_ln_b"])


# ------------------------------------ main --------------------------------------
if __name__ == "__main__":
    key = jax.random.PRNGKey(0)
    k_img, k_param = jax.random.split(key)

    # small shapes consistent with the module (channels=1, NCHW image input)
    B, C, H, W = 2, 1, 16, 16
    patch_size = 8
    dim, depth, heads, dim_head, mlp_dim = 32, 2, 4, 8, 64
    patch_dim = C * patch_size * patch_size            # 64
    num_patches = (H // patch_size) * (W // patch_size)  # 4

    img = jax.random.normal(k_img, (B, C, H, W), jnp.float32)
    params = init_params(k_param, patch_dim, dim, depth, heads, dim_head, mlp_dim)
    packed = prepare_params(params, heads=heads, dim_head=dim_head)

    fwd = jax.jit(functools.partial(simple_vit_forward, patch_size=patch_size,
                                    dim=dim, patch_dim=patch_dim))
    out = jax.block_until_ready(fwd(img, packed))

    assert out.shape == (B, num_patches, dim), out.shape
    assert bool(jnp.all(jnp.isfinite(out)))

    # loose check vs f32 reference (kernel runs matmuls with bf16 operands)
    ref = _reference_forward(img, params, patch_size=patch_size,
                             heads=heads, dim_head=dim_head)
    max_err = float(jnp.max(jnp.abs(out - ref)))
    assert max_err < 0.1, f"max abs error vs reference: {max_err}"

    print("KERNEL_OK")
</pallas_src>

<mosaic_0001>
module attributes {stable_mosaic.version = 11 : i64} {
  func.func @fused_vit_kernel(%arg0: i32, %arg1: i32, %arg2: memref<1x4x128xf32, #tpu.memory_space<vmem>>, %arg3: memref<1x128xf32, #tpu.memory_space<vmem>>, %arg4: memref<1x128xf32, #tpu.memory_space<vmem>>, %arg5: memref<128x128xbf16, #tpu.memory_space<vmem>>, %arg6: memref<1x128xf32, #tpu.memory_space<vmem>>, %arg7: memref<1x128xf32, #tpu.memory_space<vmem>>, %arg8: memref<1x128xf32, #tpu.memory_space<vmem>>, %arg9: memref<1x1x128xf32, #tpu.memory_space<vmem>>, %arg10: memref<1x1x128xf32, #tpu.memory_space<vmem>>, %arg11: memref<1x4x128x8xbf16, #tpu.memory_space<vmem>>, %arg12: memref<1x4x128x8xbf16, #tpu.memory_space<vmem>>, %arg13: memref<1x4x128x8xbf16, #tpu.memory_space<vmem>>, %arg14: memref<1x4x8x128xbf16, #tpu.memory_space<vmem>>, %arg15: memref<1x1x128xf32, #tpu.memory_space<vmem>>, %arg16: memref<1x1x128xf32, #tpu.memory_space<vmem>>, %arg17: memref<1x128x128xbf16, #tpu.memory_space<vmem>>, %arg18: memref<1x1x128xf32, #tpu.memory_space<vmem>>, %arg19: memref<1x128x128xbf16, #tpu.memory_space<vmem>>, %arg20: memref<1x1x128xf32, #tpu.memory_space<vmem>>, %arg21: memref<1x128xf32, #tpu.memory_space<vmem>>, %arg22: memref<1x128xf32, #tpu.memory_space<vmem>>, %arg23: memref<1x4x128xf32, #tpu.memory_space<vmem>>, %arg24: memref<4x128xf32, #tpu.memory_space<vmem>>) attributes {dimension_semantics = [#tpu.dimension_semantics<parallel>, #tpu.dimension_semantics<arbitrary>], iteration_bounds = array<i64: 2, 2>, scalar_prefetch = 0 : i64, scratch_operands = 1 : i64, tpu.core_type = #tpu.core_type<tc>, window_params = [{transform_indices = @transform_0, window_bounds = array<i64: 1, 4, 128>}, {pipeline_mode = #tpu.pipeline_mode<synchronous>, transform_indices = @transform_1, window_bounds = array<i64: 1, 128>}, {pipeline_mode = #tpu.pipeline_mode<synchronous>, transform_indices = @transform_2, window_bounds = array<i64: 1, 128>}, {pipeline_mode = #tpu.pipeline_mode<synchronous>, transform_indices = @transform_3, window_bounds = array<i64: 128, 128>}, {pipeline_mode = #tpu.pipeline_mode<synchronous>, transform_indices = @transform_4, window_bounds = array<i64: 1, 128>}, {pipeline_mode = #tpu.pipeline_mode<synchronous>, transform_indices = @transform_5, window_bounds = array<i64: 1, 128>}, {pipeline_mode = #tpu.pipeline_mode<synchronous>, transform_indices = @transform_6, window_bounds = array<i64: 1, 128>}, {transform_indices = @transform_7, window_bounds = array<i64: 1, 1, 128>}, {transform_indices = @transform_8, window_bounds = array<i64: 1, 1, 128>}, {transform_indices = @transform_9, window_bounds = array<i64: 1, 4, 128, 8>}, {transform_indices = @transform_10, window_bounds = array<i64: 1, 4, 128, 8>}, {transform_indices = @transform_11, window_bounds = array<i64: 1, 4, 128, 8>}, {transform_indices = @transform_12, window_bounds = array<i64: 1, 4, 8, 128>}, {transform_indices = @transform_13, window_bounds = array<i64: 1, 1, 128>}, {transform_indices = @transform_14, window_bounds = array<i64: 1, 1, 128>}, {transform_indices = @transform_15, window_bounds = array<i64: 1, 128, 128>}, {transform_indices = @transform_16, window_bounds = array<i64: 1, 1, 128>}, {transform_indices = @transform_17, window_bounds = array<i64: 1, 128, 128>}, {transform_indices = @transform_18, window_bounds = array<i64: 1, 1, 128>}, {pipeline_mode = #tpu.pipeline_mode<synchronous>, transform_indices = @transform_19, window_bounds = array<i64: 1, 128>}, {pipeline_mode = #tpu.pipeline_mode<synchronous>, transform_indices = @transform_20, window_bounds = array<i64: 1, 128>}, {transform_indices = @transform_21, window_bounds = array<i64: 1, 4, 128>}]} {
    %c0_i32 = arith.constant 0 : i32
    %0 = arith.cmpi eq, %arg1, %c0_i32 : i32
    %1 = arith.extui %0 : i1 to i32
    %cst = arith.constant 1.562500e-02 : f32
    %cst_0 = arith.constant 3.125000e-02 : f32
    %c0_i32_1 = arith.constant 0 : i32
    %2 = arith.cmpi ne, %1, %c0_i32_1 : i32
    scf.if %2 {
      %c0_71 = arith.constant 0 : index
      %c0_72 = arith.constant 0 : index
      %c0_73 = arith.constant 0 : index
      %120 = vector.load %arg2[%c0_71, %c0_72, %c0_73] : memref<1x4x128xf32, #tpu.memory_space<vmem>>, vector<1x4x128xf32>
      %121 = vector.shape_cast %120 : vector<1x4x128xf32> to vector<4x128xf32>
      %c0_74 = arith.constant 0 : index
      %c0_75 = arith.constant 0 : index
      %122 = vector.load %arg3[%c0_74, %c0_75] : memref<1x128xf32, #tpu.memory_space<vmem>>, vector<1x128xf32>
      %c0_76 = arith.constant 0 : index
      %c0_77 = arith.constant 0 : index
      %123 = vector.load %arg4[%c0_76, %c0_77] : memref<1x128xf32, #tpu.memory_space<vmem>>, vector<1x128xf32>
      %cst_78 = arith.constant dense<0.000000e+00> : vector<4xf32>
      %124 = vector.multi_reduction <add>, %121, %cst_78 [1] : vector<4x128xf32> to vector<4xf32>
      %125 = vector.shape_cast %124 : vector<4xf32> to vector<4x1xf32>
      %126 = vector.broadcast %cst : f32 to vector<4x1xf32>
      %127 = arith.mulf %125, %126 : vector<4x1xf32>
      %128 = arith.mulf %121, %121 : vector<4x128xf32>
      %cst_79 = arith.constant dense<0.000000e+00> : vector<4xf32>
      %129 = vector.multi_reduction <add>, %128, %cst_79 [1] : vector<4x128xf32> to vector<4xf32>
      %130 = vector.shape_cast %129 : vector<4xf32> to vector<4x1xf32>
      %131 = vector.broadcast %cst : f32 to vector<4x1xf32>
      %132 = arith.mulf %130, %131 : vector<4x1xf32>
      %133 = arith.mulf %127, %127 : vector<4x1xf32>
      %134 = arith.subf %132, %133 : vector<4x1xf32>
      %135 = vector.broadcast %127 : vector<4x1xf32> to vector<4x128xf32>
      %136 = arith.subf %121, %135 : vector<4x128xf32>
      %cst_80 = arith.constant 9.99999974E-6 : f32
      %137 = vector.broadcast %cst_80 : f32 to vector<4x1xf32>
      %138 = arith.addf %134, %137 : vector<4x1xf32>
      %139 = math.rsqrt %138 : vector<4x1xf32>
      %140 = vector.broadcast %139 : vector<4x1xf32> to vector<4x128xf32>
      %141 = arith.mulf %136, %140 : vector<4x128xf32>
      %142 = vector.broadcast %122 : vector<1x128xf32> to vector<4x128xf32>
      %143 = arith.mulf %141, %142 : vector<4x128xf32>
      %144 = vector.broadcast %123 : vector<1x128xf32> to vector<4x128xf32>
      %145 = arith.addf %143, %144 : vector<4x128xf32>
      %146 = arith.truncf %145 : vector<4x128xf32> to vector<4x128xbf16>
      %c0_81 = arith.constant 0 : index
      %c0_82 = arith.constant 0 : index
      %147 = vector.load %arg5[%c0_81, %c0_82] : memref<128x128xbf16, #tpu.memory_space<vmem>>, vector<128x128xbf16>
      %cst_83 = arith.constant dense<0.000000e+00> : vector<4x128xf32>
      %148 = tpu.matmul %146, %147, %cst_83 {dimension_numbers = #tpu.dot_dimension_numbers<[1], [0], [0], [1], [0, 0, 1, 1], [], []>} : vector<4x128xbf16>, vector<128x128xbf16>, vector<4x128xf32> -> vector<4x128xf32>
      %c0_84 = arith.constant 0 : index
      %c0_85 = arith.constant 0 : index
      %149 = vector.load %arg6[%c0_84, %c0_85] : memref<1x128xf32, #tpu.memory_space<vmem>>, vector<1x128xf32>
      %150 = vector.broadcast %149 : vector<1x128xf32> to vector<4x128xf32>
      %151 = arith.addf %148, %150 : vector<4x128xf32>
      %c0_86 = arith.constant 0 : index
      %c0_87 = arith.constant 0 : index
      %152 = vector.load %arg7[%c0_86, %c0_87] : memref<1x128xf32, #tpu.memory_space<vmem>>, vector<1x128xf32>
      %c0_88 = arith.constant 0 : index
      %c0_89 = arith.constant 0 : index
      %153 = vector.load %arg8[%c0_88, %c0_89] : memref<1x128xf32, #tpu.memory_space<vmem>>, vector<1x128xf32>
      %cst_90 = arith.constant dense<0.000000e+00> : vector<4xf32>
      %154 = vector.multi_reduction <add>, %151, %cst_90 [1] : vector<4x128xf32> to vector<4xf32>
      %155 = vector.shape_cast %154 : vector<4xf32> to vector<4x1xf32>
      %156 = vector.broadcast %cst_0 : f32 to vector<4x1xf32>
      %157 = arith.mulf %155, %156 : vector<4x1xf32>
      %158 = arith.mulf %151, %151 : vector<4x128xf32>
      %cst_91 = arith.constant dense<0.000000e+00> : vector<4xf32>
      %159 = vector.multi_reduction <add>, %158, %cst_91 [1] : vector<4x128xf32> to vector<4xf32>
      %160 = vector.shape_cast %159 : vector<4xf32> to vector<4x1xf32>
      %161 = vector.broadcast %cst_0 : f32 to vector<4x1xf32>
      %162 = arith.mulf %160, %161 : vector<4x1xf32>
      %163 = arith.mulf %157, %157 : vector<4x1xf32>
      %164 = arith.subf %162, %163 : vector<4x1xf32>
      %165 = vector.broadcast %157 : vector<4x1xf32> to vector<4x128xf32>
      %166 = arith.subf %151, %165 : vector<4x128xf32>
      %cst_92 = arith.constant 9.99999974E-6 : f32
      %167 = vector.broadcast %cst_92 : f32 to vector<4x1xf32>
      %168 = arith.addf %164, %167 : vector<4x1xf32>
      %169 = math.rsqrt %168 : vector<4x1xf32>
      %170 = vector.broadcast %169 : vector<4x1xf32> to vector<4x128xf32>
      %171 = arith.mulf %166, %170 : vector<4x128xf32>
      %172 = vector.broadcast %152 : vector<1x128xf32> to vector<4x128xf32>
      %173 = arith.mulf %171, %172 : vector<4x128xf32>
      %174 = vector.broadcast %153 : vector<1x128xf32> to vector<4x128xf32>
      %175 = arith.addf %173, %174 : vector<4x128xf32>
      %c0_93 = arith.constant 0 : index
      %c0_94 = arith.constant 0 : index
      %176 = vector.load %arg24[%c0_93, %c0_94] : memref<4x128xf32, #tpu.memory_space<vmem>>, vector<4x128xf32>
      tpu.vector_store %arg24[%c0_93, %c0_94], %175 {strides = array<i32>} : memref<4x128xf32, #tpu.memory_space<vmem>>, vector<4x128xf32>,
    } else {
    }
    %c0 = arith.constant 0 : index
    %c0_2 = arith.constant 0 : index
    %3 = vector.load %arg24[%c0, %c0_2] : memref<4x128xf32, #tpu.memory_space<vmem>>, vector<4x128xf32>
    %c0_3 = arith.constant 0 : index
    %c0_4 = arith.constant 0 : index
    %c0_5 = arith.constant 0 : index
    %4 = vector.load %arg9[%c0_3, %c0_4, %c0_5] : memref<1x1x128xf32, #tpu.memory_space<vmem>>, vector<1x1x128xf32>
    %5 = vector.shape_cast %4 : vector<1x1x128xf32> to vector<1x128xf32>
    %c0_6 = arith.constant 0 : index
    %c0_7 = arith.constant 0 : index
    %c0_8 = arith.constant 0 : index
    %6 = vector.load %arg10[%c0_6, %c0_7, %c0_8] : memref<1x1x128xf32, #tpu.memory_space<vmem>>, vector<1x1x128xf32>
    %7 = vector.shape_cast %6 : vector<1x1x128xf32> to vector<1x128xf32>
    %cst_9 = arith.constant dense<0.000000e+00> : vector<4xf32>
    %8 = vector.multi_reduction <add>, %3, %cst_9 [1] : vector<4x128xf32> to vector<4xf32>
    %9 = vector.shape_cast %8 : vector<4xf32> to vector<4x1xf32>
    %cst_10 = arith.constant 3.125000e-02 : f32
    %10 = vector.broadcast %cst_10 : f32 to vector<4x1xf32>
    %11 = arith.mulf %9, %10 : vector<4x1xf32>
    %12 = arith.mulf %3, %3 : vector<4x128xf32>
    %cst_11 = arith.constant dense<0.000000e+00> : vector<4xf32>
    %13 = vector.multi_reduction <add>, %12, %cst_11 [1] : vector<4x128xf32> to vector<4xf32>
    %14 = vector.shape_cast %13 : vector<4xf32> to vector<4x1xf32>
    %cst_12 = arith.constant 3.125000e-02 : f32
    %15 = vector.broadcast %cst_12 : f32 to vector<4x1xf32>
    %16 = arith.mulf %14, %15 : vector<4x1xf32>
    %17 = arith.mulf %11, %11 : vector<4x1xf32>
    %18 = arith.subf %16, %17 : vector<4x1xf32>
    %19 = vector.broadcast %11 : vector<4x1xf32> to vector<4x128xf32>
    %20 = arith.subf %3, %19 : vector<4x128xf32>
    %cst_13 = arith.constant 9.99999974E-6 : f32
    %21 = vector.broadcast %cst_13 : f32 to vector<4x1xf32>
    %22 = arith.addf %18, %21 : vector<4x1xf32>
    %23 = math.rsqrt %22 : vector<4x1xf32>
    %24 = vector.broadcast %23 : vector<4x1xf32> to vector<4x128xf32>
    %25 = arith.mulf %20, %24 : vector<4x128xf32>
    %26 = vector.broadcast %5 : vector<1x128xf32> to vector<4x128xf32>
    %27 = arith.mulf %25, %26 : vector<4x128xf32>
    %28 = vector.broadcast %7 : vector<1x128xf32> to vector<4x128xf32>
    %29 = arith.addf %27, %28 : vector<4x128xf32>
    %30 = arith.truncf %29 : vector<4x128xf32> to vector<4x128xbf16>
    %31 = vector.shape_cast %30 : vector<4x128xbf16> to vector<1x4x128xbf16>
    %32 = vector.shape_cast %31 : vector<1x4x128xbf16> to vector<1x4x128xbf16>
    %33 = vector.broadcast %32 : vector<1x4x128xbf16> to vector<4x4x128xbf16>
    %c0_14 = arith.constant 0 : index
    %c0_15 = arith.constant 0 : index
    %c0_16 = arith.constant 0 : index
    %c0_17 = arith.constant 0 : index
    %34 = vector.load %arg11[%c0_14, %c0_15, %c0_16, %c0_17] : memref<1x4x128x8xbf16, #tpu.memory_space<vmem>>, vector<1x4x128x8xbf16>
    %35 = vector.shape_cast %34 : vector<1x4x128x8xbf16> to vector<4x128x8xbf16>
    %cst_18 = arith.constant dense<0.000000e+00> : vector<4x4x8xf32>
    %36 = tpu.matmul %33, %35, %cst_18 {dimension_numbers = #tpu.dot_dimension_numbers<[2], [1], [1], [2], [0, 0, 0, 1, 1, 2], [0], [0]>} : vector<4x4x128xbf16>, vector<4x128x8xbf16>, vector<4x4x8xf32> -> vector<4x4x8xf32>
    %c0_19 = arith.constant 0 : index
    %c0_20 = arith.constant 0 : index
    %c0_21 = arith.constant 0 : index
    %c0_22 = arith.constant 0 : index
    %37 = vector.load %arg12[%c0_19, %c0_20, %c0_21, %c0_22] : memref<1x4x128x8xbf16, #tpu.memory_space<vmem>>, vector<1x4x128x8xbf16>
    %38 = vector.shape_cast %37 : vector<1x4x128x8xbf16> to vector<4x128x8xbf16>
    %cst_23 = arith.constant dense<0.000000e+00> : vector<4x4x8xf32>
    %39 = tpu.matmul %33, %38, %cst_23 {dimension_numbers = #tpu.dot_dimension_numbers<[2], [1], [1], [2], [0, 0, 0, 1, 1, 2], [0], [0]>} : vector<4x4x128xbf16>, vector<4x128x8xbf16>, vector<4x4x8xf32> -> vector<4x4x8xf32>
    %c0_24 = arith.constant 0 : index
    %c0_25 = arith.constant 0 : index
    %c0_26 = arith.constant 0 : index
    %c0_27 = arith.constant 0 : index
    %40 = vector.load %arg13[%c0_24, %c0_25, %c0_26, %c0_27] : memref<1x4x128x8xbf16, #tpu.memory_space<vmem>>, vector<1x4x128x8xbf16>
    %41 = vector.shape_cast %40 : vector<1x4x128x8xbf16> to vector<4x128x8xbf16>
    %cst_28 = arith.constant dense<0.000000e+00> : vector<4x4x8xf32>
    %42 = tpu.matmul %33, %41, %cst_28 {dimension_numbers = #tpu.dot_dimension_numbers<[2], [1], [1], [2], [0, 0, 0, 1, 1, 2], [0], [0]>} : vector<4x4x128xbf16>, vector<4x128x8xbf16>, vector<4x4x8xf32> -> vector<4x4x8xf32>
    %43 = arith.truncf %36 : vector<4x4x8xf32> to vector<4x4x8xbf16>
    %44 = arith.truncf %39 : vector<4x4x8xf32> to vector<4x4x8xbf16>
    %cst_29 = arith.constant dense<0.000000e+00> : vector<4x4x4xf32>
    %45 = tpu.matmul %43, %44, %cst_29 {dimension_numbers = #tpu.dot_dimension_numbers<[2], [2], [1], [1], [0, 0, 0, 1, 1, 1], [0], [0]>} : vector<4x4x8xbf16>, vector<4x4x8xbf16>, vector<4x4x4xf32> -> vector<4x4x4xf32>
    %cst_30 = arith.constant dense<0xFF800000> : vector<4x4xf32>
    %46 = vector.multi_reduction <maximumf>, %45, %cst_30 [2] : vector<4x4x4xf32> to vector<4x4xf32>
    %47 = vector.shape_cast %46 : vector<4x4xf32> to vector<4x4x1xf32>
    %48 = vector.broadcast %47 : vector<4x4x1xf32> to vector<4x4x4xf32>
    %49 = arith.subf %45, %48 : vector<4x4x4xf32>
    %50 = math.exp %49 : vector<4x4x4xf32>
    %cst_31 = arith.constant dense<0.000000e+00> : vector<4x4xf32>
    %51 = vector.multi_reduction <add>, %50, %cst_31 [2] : vector<4x4x4xf32> to vector<4x4xf32>
    %52 = vector.shape_cast %51 : vector<4x4xf32> to vector<4x4x1xf32>
    %53 = tpu.reciprocal %52 {approx = true} : vector<4x4x1xf32> -> vector<4x4x1xf32>
    %54 = vector.broadcast %53 : vector<4x4x1xf32> to vector<4x4x4xf32>
    %55 = arith.mulf %50, %54 : vector<4x4x4xf32>
    %56 = arith.truncf %55 : vector<4x4x4xf32> to vector<4x4x4xbf16>
    %57 = arith.truncf %42 : vector<4x4x8xf32> to vector<4x4x8xbf16>
    %cst_32 = arith.constant dense<0.000000e+00> : vector<4x4x8xf32>
    %58 = tpu.matmul %56, %57, %cst_32 {dimension_numbers = #tpu.dot_dimension_numbers<[2], [1], [1], [2], [0, 0, 0, 1, 1, 2], [0], [0]>} : vector<4x4x4xbf16>, vector<4x4x8xbf16>, vector<4x4x8xf32> -> vector<4x4x8xf32>
    %59 = arith.truncf %58 : vector<4x4x8xf32> to vector<4x4x8xbf16>
    %c0_33 = arith.constant 0 : index
    %c0_34 = arith.constant 0 : index
    %c0_35 = arith.constant 0 : index
    %c0_36 = arith.constant 0 : index
    %60 = vector.load %arg14[%c0_33, %c0_34, %c0_35, %c0_36] : memref<1x4x8x128xbf16, #tpu.memory_space<vmem>>, vector<1x4x8x128xbf16>
    %61 = vector.shape_cast %60 : vector<1x4x8x128xbf16> to vector<4x8x128xbf16>
    %cst_37 = arith.constant dense<0.000000e+00> : vector<4x4x128xf32>
    %62 = tpu.matmul %59, %61, %cst_37 {dimension_numbers = #tpu.dot_dimension_numbers<[2], [1], [1], [2], [0, 0, 0, 1, 1, 2], [0], [0]>} : vector<4x4x8xbf16>, vector<4x8x128xbf16>, vector<4x4x128xf32> -> vector<4x4x128xf32>
    %cst_38 = arith.constant dense<0.000000e+00> : vector<4x128xf32>
    %63 = vector.multi_reduction <add>, %62, %cst_38 [0] : vector<4x4x128xf32> to vector<4x128xf32>
    %64 = arith.addf %3, %63 : vector<4x128xf32>
    %c0_39 = arith.constant 0 : index
    %c0_40 = arith.constant 0 : index
    %c0_41 = arith.constant 0 : index
    %65 = vector.load %arg15[%c0_39, %c0_40, %c0_41] : memref<1x1x128xf32, #tpu.memory_space<vmem>>, vector<1x1x128xf32>
    %66 = vector.shape_cast %65 : vector<1x1x128xf32> to vector<1x128xf32>
    %c0_42 = arith.constant 0 : index
    %c0_43 = arith.constant 0 : index
    %c0_44 = arith.constant 0 : index
    %67 = vector.load %arg16[%c0_42, %c0_43, %c0_44] : memref<1x1x128xf32, #tpu.memory_space<vmem>>, vector<1x1x128xf32>
    %68 = vector.shape_cast %67 : vector<1x1x128xf32> to vector<1x128xf32>
    %cst_45 = arith.constant dense<0.000000e+00> : vector<4xf32>
    %69 = vector.multi_reduction <add>, %64, %cst_45 [1] : vector<4x128xf32> to vector<4xf32>
    %70 = vector.shape_cast %69 : vector<4xf32> to vector<4x1xf32>
    %cst_46 = arith.constant 3.125000e-02 : f32
    %71 = vector.broadcast %cst_46 : f32 to vector<4x1xf32>
    %72 = arith.mulf %70, %71 : vector<4x1xf32>
    %73 = arith.mulf %64, %64 : vector<4x128xf32>
    %cst_47 = arith.constant dense<0.000000e+00> : vector<4xf32>
    %74 = vector.multi_reduction <add>, %73, %cst_47 [1] : vector<4x128xf32> to vector<4xf32>
    %75 = vector.shape_cast %74 : vector<4xf32> to vector<4x1xf32>
    %cst_48 = arith.constant 3.125000e-02 : f32
    %76 = vector.broadcast %cst_48 : f32 to vector<4x1xf32>
    %77 = arith.mulf %75, %76 : vector<4x1xf32>
    %78 = arith.mulf %72, %72 : vector<4x1xf32>
    %79 = arith.subf %77, %78 : vector<4x1xf32>
    %80 = vector.broadcast %72 : vector<4x1xf32> to vector<4x128xf32>
    %81 = arith.subf %64, %80 : vector<4x128xf32>
    %cst_49 = arith.constant 9.99999974E-6 : f32
    %82 = vector.broadcast %cst_49 : f32 to vector<4x1xf32>
    %83 = arith.addf %79, %82 : vector<4x1xf32>
    %84 = math.rsqrt %83 : vector<4x1xf32>
    %85 = vector.broadcast %84 : vector<4x1xf32> to vector<4x128xf32>
    %86 = arith.mulf %81, %85 : vector<4x128xf32>
    %87 = vector.broadcast %66 : vector<1x128xf32> to vector<4x128xf32>
    %88 = arith.mulf %86, %87 : vector<4x128xf32>
    %89 = vector.broadcast %68 : vector<1x128xf32> to vector<4x128xf32>
    %90 = arith.addf %88, %89 : vector<4x128xf32>
    %91 = arith.truncf %90 : vector<4x128xf32> to vector<4x128xbf16>
    %c0_50 = arith.constant 0 : index
    %c0_51 = arith.constant 0 : index
    %c0_52 = arith.constant 0 : index
    %92 = vector.load %arg17[%c0_50, %c0_51, %c0_52] : memref<1x128x128xbf16, #tpu.memory_space<vmem>>, vector<1x128x128xbf16>
    %93 = vector.shape_cast %92 : vector<1x128x128xbf16> to vector<128x128xbf16>
    %cst_53 = arith.constant dense<0.000000e+00> : vector<4x128xf32>
    %94 = tpu.matmul %91, %93, %cst_53 {dimension_numbers = #tpu.dot_dimension_numbers<[1], [0], [0], [1], [0, 0, 1, 1], [], []>} : vector<4x128xbf16>, vector<128x128xbf16>, vector<4x128xf32> -> vector<4x128xf32>
    %c0_54 = arith.constant 0 : index
    %c0_55 = arith.constant 0 : index
    %c0_56 = arith.constant 0 : index
    %95 = vector.load %arg18[%c0_54, %c0_55, %c0_56] : memref<1x1x128xf32, #tpu.memory_space<vmem>>, vector<1x1x128xf32>
    %96 = vector.shape_cast %95 : vector<1x1x128xf32> to vector<1x128xf32>
    %97 = vector.broadcast %96 : vector<1x128xf32> to vector<4x128xf32>
    %98 = arith.addf %94, %97 : vector<4x128xf32>
    %cst_57 = arith.constant 5.000000e-01 : f32
    %99 = vector.broadcast %cst_57 : f32 to vector<4x128xf32>
    %100 = arith.mulf %99, %98 : vector<4x128xf32>
    %cst_58 = arith.constant 0.707106769 : f32
    %101 = vector.broadcast %cst_58 : f32 to vector<4x128xf32>
    %102 = arith.mulf %98, %101 : vector<4x128xf32>
    %103 = math.erf %102 : vector<4x128xf32>
    %cst_59 = arith.constant 1.000000e+00 : f32
    %104 = vector.broadcast %cst_59 : f32 to vector<4x128xf32>
    %105 = arith.addf %104, %103 : vector<4x128xf32>
    %106 = arith.mulf %100, %105 : vector<4x128xf32>
    %107 = arith.truncf %106 : vector<4x128xf32> to vector<4x128xbf16>
    %c0_60 = arith.constant 0 : index
    %c0_61 = arith.constant 0 : index
    %c0_62 = arith.constant 0 : index
    %108 = vector.load %arg19[%c0_60, %c0_61, %c0_62] : memref<1x128x128xbf16, #tpu.memory_space<vmem>>, vector<1x128x128xbf16>
    %109 = vector.shape_cast %108 : vector<1x128x128xbf16> to vector<128x128xbf16>
    %cst_63 = arith.constant dense<0.000000e+00> : vector<4x128xf32>
    %110 = tpu.matmul %107, %109, %cst_63 {dimension_numbers = #tpu.dot_dimension_numbers<[1], [0], [0], [1], [0, 0, 1, 1], [], []>} : vector<4x128xbf16>, vector<128x128xbf16>, vector<4x128xf32> -> vector<4x128xf32>
    %c0_64 = arith.constant 0 : index
    %c0_65 = arith.constant 0 : index
    %c0_66 = arith.constant 0 : index
    %111 = vector.load %arg20[%c0_64, %c0_65, %c0_66] : memref<1x1x128xf32, #tpu.memory_space<vmem>>, vector<1x1x128xf32>
    %112 = vector.shape_cast %111 : vector<1x1x128xf32> to vector<1x128xf32>
    %113 = vector.broadcast %112 : vector<1x128xf32> to vector<4x128xf32>
    %114 = arith.addf %110, %113 : vector<4x128xf32>
    %115 = arith.addf %64, %114 : vector<4x128xf32>
    %c0_67 = arith.constant 0 : index
    %c0_68 = arith.constant 0 : index
    %116 = vector.load %arg24[%c0_67, %c0_68] : memref<4x128xf32, #tpu.memory_space<vmem>>, vector<4x128xf32>
    tpu.vector_store %arg24[%c0_67, %c0_68], %115 {strides = array<i32>} : memref<4x128xf32, #tpu.memory_space<vmem>>, vector<4x128xf32>,
    %c1_i32 = arith.constant 1 : i32
    %117 = arith.cmpi eq, %arg1, %c1_i32 : i32
    %118 = arith.extui %117 : i1 to i32
    %cst_69 = arith.constant 3.125000e-02 : f32
    %c0_i32_70 = arith.constant 0 : i32
    %119 = arith.cmpi ne, %118, %c0_i32_70 : i32
    scf.if %119 {
      %c0_71 = arith.constant 0 : index
      %c0_72 = arith.constant 0 : index
      %120 = vector.load %arg21[%c0_71, %c0_72] : memref<1x128xf32, #tpu.memory_space<vmem>>, vector<1x128xf32>
      %c0_73 = arith.constant 0 : index
      %c0_74 = arith.constant 0 : index
      %121 = vector.load %arg22[%c0_73, %c0_74] : memref<1x128xf32, #tpu.memory_space<vmem>>, vector<1x128xf32>
      %cst_75 = arith.constant dense<0.000000e+00> : vector<4xf32>
      %122 = vector.multi_reduction <add>, %115, %cst_75 [1] : vector<4x128xf32> to vector<4xf32>
      %123 = vector.shape_cast %122 : vector<4xf32> to vector<4x1xf32>
      %124 = vector.broadcast %cst_69 : f32 to vector<4x1xf32>
      %125 = arith.mulf %123, %124 : vector<4x1xf32>
      %126 = arith.mulf %115, %115 : vector<4x128xf32>
      %cst_76 = arith.constant dense<0.000000e+00> : vector<4xf32>
      %127 = vector.multi_reduction <add>, %126, %cst_76 [1] : vector<4x128xf32> to vector<4xf32>
      %128 = vector.shape_cast %127 : vector<4xf32> to vector<4x1xf32>
      %129 = vector.broadcast %cst_69 : f32 to vector<4x1xf32>
      %130 = arith.mulf %128, %129 : vector<4x1xf32>
      %131 = arith.mulf %125, %125 : vector<4x1xf32>
      %132 = arith.subf %130, %131 : vector<4x1xf32>
      %133 = vector.broadcast %125 : vector<4x1xf32> to vector<4x128xf32>
      %134 = arith.subf %115, %133 : vector<4x128xf32>
      %cst_77 = arith.constant 9.99999974E-6 : f32
      %135 = vector.broadcast %cst_77 : f32 to vector<4x1xf32>
      %136 = arith.addf %132, %135 : vector<4x1xf32>
      %137 = math.rsqrt %136 : vector<4x1xf32>
      %138 = vector.broadcast %137 : vector<4x1xf32> to vector<4x128xf32>
      %139 = arith.mulf %134, %138 : vector<4x128xf32>
      %140 = vector.broadcast %120 : vector<1x128xf32> to vector<4x128xf32>
      %141 = arith.mulf %139, %140 : vector<4x128xf32>
      %142 = vector.broadcast %121 : vector<1x128xf32> to vector<4x128xf32>
      %143 = arith.addf %141, %142 : vector<4x128xf32>
      %c0_78 = arith.constant 0 : index
      %c0_79 = arith.constant 0 : index
      %c0_80 = arith.constant 0 : index
      %144 = vector.load %arg23[%c0_78, %c0_79, %c0_80] : memref<1x4x128xf32, #tpu.memory_space<vmem>>, vector<1x4x128xf32>
      %145 = vector.shape_cast %144 : vector<1x4x128xf32> to vector<4x128xf32>
      %146 = vector.shape_cast %143 : vector<4x128xf32> to vector<1x4x128xf32>
      tpu.vector_store %arg23[%c0_78, %c0_79, %c0_80], %146 {strides = array<i32>} : memref<1x4x128xf32, #tpu.memory_space<vmem>>, vector<1x4x128xf32>,
    } else {
    }
    return
  }
  func.func @transform_0(%arg0: i32, %arg1: i32) -> (i32, i32, i32) {
    %c0_i32 = arith.constant 0 : i32
    %c0_i32_0 = arith.constant 0 : i32
    %c0_i32_1 = arith.constant 0 : i32
    return %arg0, %c0_i32, %c0_i32_0 : i32, i32, i32
  }
  func.func @transform_1(%arg0: i32, %arg1: i32) -> (i32, i32) {
    %c0_i32 = arith.constant 0 : i32
    %c0_i32_0 = arith.constant 0 : i32
    %c0_i32_1 = arith.constant 0 : i32
    return %c0_i32, %c0_i32_0 : i32, i32
  }
  func.func @transform_2(%arg0: i32, %arg1: i32) -> (i32, i32) {
    %c0_i32 = arith.constant 0 : i32
    %c0_i32_0 = arith.constant 0 : i32
    %c0_i32_1 = arith.constant 0 : i32
    return %c0_i32, %c0_i32_0 : i32, i32
  }
  func.func @transform_3(%arg0: i32, %arg1: i32) -> (i32, i32) {
    %c0_i32 = arith.constant 0 : i32
    %c0_i32_0 = arith.constant 0 : i32
    %c0_i32_1 = arith.constant 0 : i32
    return %c0_i32, %c0_i32_0 : i32, i32
  }
  func.func @transform_4(%arg0: i32, %arg1: i32) -> (i32, i32) {
    %c0_i32 = arith.constant 0 : i32
    %c0_i32_0 = arith.constant 0 : i32
    %c0_i32_1 = arith.constant 0 : i32
    return %c0_i32, %c0_i32_0 : i32, i32
  }
  func.func @transform_5(%arg0: i32, %arg1: i32) -> (i32, i32) {
    %c0_i32 = arith.constant 0 : i32
    %c0_i32_0 = arith.constant 0 : i32
    %c0_i32_1 = arith.constant 0 : i32
    return %c0_i32, %c0_i32_0 : i32, i32
  }
  func.func @transform_6(%arg0: i32, %arg1: i32) -> (i32, i32) {
    %c0_i32 = arith.constant 0 : i32
    %c0_i32_0 = arith.constant 0 : i32
    %c0_i32_1 = arith.constant 0 : i32
    return %c0_i32, %c0_i32_0 : i32, i32
  }
  func.func @transform_7(%arg0: i32, %arg1: i32) -> (i32, i32, i32) {
    %c0_i32 = arith.constant 0 : i32
    %c0_i32_0 = arith.constant 0 : i32
    %c0_i32_1 = arith.constant 0 : i32
    return %arg1, %c0_i32, %c0_i32_0 : i32, i32, i32
  }
  func.func @transform_8(%arg0: i32, %arg1: i32) -> (i32, i32, i32) {
    %c0_i32 = arith.constant 0 : i32
    %c0_i32_0 = arith.constant 0 : i32
    %c0_i32_1 = arith.constant 0 : i32
    return %arg1, %c0_i32, %c0_i32_0 : i32, i32, i32
  }
  func.func @transform_9(%arg0: i32, %arg1: i32) -> (i32, i32, i32, i32) {
    %c0_i32 = arith.constant 0 : i32
    %c0_i32_0 = arith.constant 0 : i32
    %c0_i32_1 = arith.constant 0 : i32
    %c0_i32_2 = arith.constant 0 : i32
    return %arg1, %c0_i32, %c0_i32_0, %c0_i32_1 : i32, i32, i32, i32
  }
  func.func @transform_10(%arg0: i32, %arg1: i32) -> (i32, i32, i32, i32) {
    %c0_i32 = arith.constant 0 : i32
    %c0_i32_0 = arith.constant 0 : i32
    %c0_i32_1 = arith.constant 0 : i32
    %c0_i32_2 = arith.constant 0 : i32
    return %arg1, %c0_i32, %c0_i32_0, %c0_i32_1 : i32, i32, i32, i32
  }
  func.func @transform_11(%arg0: i32, %arg1: i32) -> (i32, i32, i32, i32) {
    %c0_i32 = arith.constant 0 : i32
    %c0_i32_0 = arith.constant 0 : i32
    %c0_i32_1 = arith.constant 0 : i32
    %c0_i32_2 = arith.constant 0 : i32
    return %arg1, %c0_i32, %c0_i32_0, %c0_i32_1 : i32, i32, i32, i32
  }
  func.func @transform_12(%arg0: i32, %arg1: i32) -> (i32, i32, i32, i32) {
    %c0_i32 = arith.constant 0 : i32
    %c0_i32_0 = arith.constant 0 : i32
    %c0_i32_1 = arith.constant 0 : i32
    %c0_i32_2 = arith.constant 0 : i32
    return %arg1, %c0_i32, %c0_i32_0, %c0_i32_1 : i32, i32, i32, i32
  }
  func.func @transform_13(%arg0: i32, %arg1: i32) -> (i32, i32, i32) {
    %c0_i32 = arith.constant 0 : i32
    %c0_i32_0 = arith.constant 0 : i32
    %c0_i32_1 = arith.constant 0 : i32
    return %arg1, %c0_i32, %c0_i32_0 : i32, i32, i32
  }
  func.func @transform_14(%arg0: i32, %arg1: i32) -> (i32, i32, i32) {
    %c0_i32 = arith.constant 0 : i32
    %c0_i32_0 = arith.constant 0 : i32
    %c0_i32_1 = arith.constant 0 : i32
    return %arg1, %c0_i32, %c0_i32_0 : i32, i32, i32
  }
  func.func @transform_15(%arg0: i32, %arg1: i32) -> (i32, i32, i32) {
    %c0_i32 = arith.constant 0 : i32
    %c0_i32_0 = arith.constant 0 : i32
    %c0_i32_1 = arith.constant 0 : i32
    return %arg1, %c0_i32, %c0_i32_0 : i32, i32, i32
  }
  func.func @transform_16(%arg0: i32, %arg1: i32) -> (i32, i32, i32) {
    %c0_i32 = arith.constant 0 : i32
    %c0_i32_0 = arith.constant 0 : i32
    %c0_i32_1 = arith.constant 0 : i32
    return %arg1, %c0_i32, %c0_i32_0 : i32, i32, i32
  }
  func.func @transform_17(%arg0: i32, %arg1: i32) -> (i32, i32, i32) {
    %c0_i32 = arith.constant 0 : i32
    %c0_i32_0 = arith.constant 0 : i32
    %c0_i32_1 = arith.constant 0 : i32
    return %arg1, %c0_i32, %c0_i32_0 : i32, i32, i32
  }
  func.func @transform_18(%arg0: i32, %arg1: i32) -> (i32, i32, i32) {
    %c0_i32 = arith.constant 0 : i32
    %c0_i32_0 = arith.constant 0 : i32
    %c0_i32_1 = arith.constant 0 : i32
    return %arg1, %c0_i32, %c0_i32_0 : i32, i32, i32
  }
  func.func @transform_19(%arg0: i32, %arg1: i32) -> (i32, i32) {
    %c0_i32 = arith.constant 0 : i32
    %c0_i32_0 = arith.constant 0 : i32
    %c0_i32_1 = arith.constant 0 : i32
    return %c0_i32, %c0_i32_0 : i32, i32
  }
  func.func @transform_20(%arg0: i32, %arg1: i32) -> (i32, i32) {
    %c0_i32 = arith.constant 0 : i32
    %c0_i32_0 = arith.constant 0 : i32
    %c0_i32_1 = arith.constant 0 : i32
    return %c0_i32, %c0_i32_0 : i32, i32
  }
  func.func @transform_21(%arg0: i32, %arg1: i32) -> (i32, i32, i32) {
    %c0_i32 = arith.constant 0 : i32
    %c0_i32_0 = arith.constant 0 : i32
    %c0_i32_1 = arith.constant 0 : i32
    return %arg0, %c0_i32, %c0_i32_0 : i32, i32, i32
  }
}

</mosaic_0001>

<llo_original>
// kernel: simple_vit_forward.1
$region0: #{simple_vit_forward.1}
  #allocation0 [shape = 'u32[]', space=smem, size = 0x4, offset = 0x4, fixed_abs, tag = 'smem constant byte address 0x4 - core index']
  #allocation1 [shape = 'u32[72,128]{1,0:T(1,128)}', space=vmem, size = 0x9000, scoped, tag = 'internal scratch']
  #allocation2 [shape = 'f32[4,128]{1,0:T(4,128)}', space=vmem, size = 0x800, scoped, tag = 'scratch operand']
  %s0 = inlined_call_operand.vmem [shape: f32[2,4,128], index: 0, kind: input, shape index: {}]
  %s1 = inlined_call_operand.vmem [shape: f32[1,128], index: 1, kind: input, shape index: {}]
  %s2 = inlined_call_operand.vmem [shape: f32[1,128], index: 2, kind: input, shape index: {}]
  %s3 = inlined_call_operand.vmem [shape: bf16[128,128], index: 3, kind: input, shape index: {}]
  %s4 = inlined_call_operand.vmem [shape: f32[1,128], index: 4, kind: input, shape index: {}]
  %s5 = inlined_call_operand.vmem [shape: f32[1,128], index: 5, kind: input, shape index: {}]
  %s6 = inlined_call_operand.vmem [shape: f32[1,128], index: 6, kind: input, shape index: {}]
  %s7 = inlined_call_operand.vmem [shape: f32[2,1,128], index: 7, kind: input, shape index: {}]
  %s8 = inlined_call_operand.vmem [shape: f32[2,1,128], index: 8, kind: input, shape index: {}]
  %s9 = inlined_call_operand.vmem [shape: bf16[2,4,128,8], index: 9, kind: input, shape index: {}]
  %s10 = inlined_call_operand.vmem [shape: bf16[2,4,128,8], index: 10, kind: input, shape index: {}]
  %s11 = inlined_call_operand.vmem [shape: bf16[2,4,128,8], index: 11, kind: input, shape index: {}]
  %s12 = inlined_call_operand.vmem [shape: bf16[2,4,8,128], index: 12, kind: input, shape index: {}]
  %s13 = inlined_call_operand.vmem [shape: f32[2,1,128], index: 13, kind: input, shape index: {}]
  %s14 = inlined_call_operand.vmem [shape: f32[2,1,128], index: 14, kind: input, shape index: {}]
  %s15 = inlined_call_operand.vmem [shape: bf16[2,128,128], index: 15, kind: input, shape index: {}]
  %s16 = inlined_call_operand.vmem [shape: f32[2,1,128], index: 16, kind: input, shape index: {}]
  %s17 = inlined_call_operand.vmem [shape: bf16[2,128,128], index: 17, kind: input, shape index: {}]
  %s18 = inlined_call_operand.vmem [shape: f32[2,1,128], index: 18, kind: input, shape index: {}]
  %s19 = inlined_call_operand.vmem [shape: f32[1,128], index: 19, kind: input, shape index: {}]
  %s20 = inlined_call_operand.vmem [shape: f32[1,128], index: 20, kind: input, shape index: {}]
  %s21 = inlined_call_operand.hbm [shape: f32[2,4,128], index: 21, kind: output, shape index: {}]
  %s22 = sld [smem:[#allocation0]]
  $region125: #{simple_vit_forward.1} parent=0
    _
  %s24 = ssub.s32 1, %s22
  %s25 = scalar_select 0, %s24, %s22
  $region1: #{simple_vit_forward.1} parent=0
    #allocation3 [shape = 'u8[4096]{0}', space=vmem, size = 0x1000, scoped, tag = 'output window, operand 0']
    #allocation4 [shape = 's32[2]{0}', space=sflag, size = 0x8, scoped, tag = 'scoped memory for simple_vit_forward.1']
    %26 = vsyncpa [#allocation4], 0
    %s27 = scalar_lea.sflag [#allocation4], 1
    %28 = vsyncpa %s27, 0
    loop: start=0, step=1, limit=6
    $region2: #{simple_vit_forward.1} parent=1 // loop_pre_header
      _
    $region3: #{simple_vit_forward.1} parent=1 // loop_header
      %s30 = sphi 0, %s34
      %p31 = scmp.ge.s32.totalorder %s30, 6
      %s37 = sphi 0, %s49
      %s38 = sphi 0, %s45
      %s39 = sphi 0, %s37
      %s40 = sphi 0, %s38
      %s41 = sphi 0, %s39
      %s42 = sphi 0, %s40
      %s52 = sphi 0, %s54
      %s55 = sphi 0, %s52
      %s56 = sphi 0, %s55
      %s72 = sphi 0, %s56
      %s76 = sphi 0, %s76
      %s78 = sphi 0, %s76
      %s79 = sphi 0, %s78
      %s93 = sphi 0, %s79
      %s97 = sphi 0, %s97
      %s99 = sphi 0, %s97
      %s100 = sphi 0, %s99
      %s114 = sphi 0, %s100
      %s118 = sphi 0, %s118
      %s120 = sphi 0, %s118
      %s121 = sphi 0, %s120
      %s135 = sphi 0, %s121
      %s139 = sphi 0, %s139
      %s141 = sphi 0, %s139
      %s142 = sphi 0, %s141
      %s156 = sphi 0, %s142
      %s160 = sphi 0, %s160
      %s162 = sphi 0, %s160
      %s163 = sphi 0, %s162
      %s177 = sphi 0, %s163
      %s181 = sphi 0, %s181
      %s183 = sphi 0, %s181
      %s184 = sphi 0, %s183
      %s198 = sphi 0, %s184
      %s204 = sphi 0, %s206
      %s207 = sphi 0, %s204
      %s208 = sphi 0, %s207
      %s224 = sphi 0, %s208
      %s230 = sphi 0, %s232
      %s233 = sphi 0, %s230
      %s234 = sphi 0, %s233
      %s250 = sphi 0, %s234
      %s256 = sphi 0, %s258
      %s259 = sphi 0, %s256
      %s260 = sphi 0, %s259
      %s276 = sphi 0, %s260
      %s282 = sphi 0, %s284
      %s285 = sphi 0, %s282
      %s286 = sphi 0, %s285
      %s302 = sphi 0, %s286
      %s308 = sphi 0, %s310
      %s311 = sphi 0, %s308
      %s312 = sphi 0, %s311
      %s328 = sphi 0, %s312
      %s334 = sphi 0, %s336
      %s337 = sphi 0, %s334
      %s338 = sphi 0, %s337
      %s354 = sphi 0, %s338
      %s360 = sphi 0, %s362
      %s363 = sphi 0, %s360
      %s364 = sphi 0, %s363
      %s380 = sphi 0, %s364
      %s386 = sphi 0, %s388
      %s389 = sphi 0, %s386
      %s390 = sphi 0, %s389
      %s406 = sphi 0, %s390
      %s412 = sphi 0, %s414
      %s415 = sphi 0, %s412
      %s416 = sphi 0, %s415
      %s432 = sphi 0, %s416
      %s438 = sphi 0, %s440
      %s441 = sphi 0, %s438
      %s442 = sphi 0, %s441
      %s458 = sphi 0, %s442
      %s464 = sphi 0, %s466
      %s467 = sphi 0, %s464
      %s468 = sphi 0, %s467
      %s484 = sphi 0, %s468
      %s490 = sphi 0, %s492
      %s493 = sphi 0, %s490
      %s494 = sphi 0, %s493
      %s510 = sphi 0, %s494
      %s514 = sphi 0, %s514
      %s516 = sphi 0, %s514
      %s517 = sphi 0, %s516
      %s531 = sphi 0, %s517
      %s535 = sphi 0, %s535
      %s537 = sphi 0, %s535
      %s538 = sphi 0, %s537
      %s552 = sphi 0, %s538
      %s558 = sphi 0, %s560
      %s561 = sphi 0, %s558
      %s562 = sphi 0, %s561
      %s578 = sphi 0, %s562
    $region4: #{simple_vit_forward.1} parent=1 // loop_header_branch
      %33 = sbr.rel (%p31) target = $region8
    $region5: #{simple_vit_forward.1} parent=1 // loop_body
      %s35 = ssub.s32 %s30, 1
      %s36 = ssub.s32 %s30, 2
      %s43 = sadd.s32 1, %s38
      %p44 = scmp.ge.s32.totalorder %s43, 2
      %s45 = scalar_select %p44, 0, %s43
      %s46 = sadd.s32 1, %s37
      %s47 = scalar_select %p44, %s46, %s37
      %p48 = scmp.ge.s32.totalorder %s47, 2
      %s49 = scalar_select %p48, 0, %s47
      %s50 = ssub.s32 %s37, %s49
      %p51 = scmp.eq.s32.totalorder %s50, 0
      %s53 = sadd.s32 %s52, 1
      %s54 = scalar_select %p51, %s52, %s53
      %p57 = pneg %p51
      %p58 = scmp.eq.s32.totalorder %s30, 3
      %p59 = por %p57, %p58
      %p60 = scmp.ne.s32.totalorder %s52, %s55
      %p61 = scmp.eq.s32.totalorder %s30, 0
      %p62 = por %p60, %p61
      %p63 = scmp.ne.s32.totalorder %s52, %s55
      %p64 = scmp.eq.s32.totalorder %s35, 3
      %p65 = por %p63, %p64
      %p66 = scmp.ne.s32.totalorder %s55, %s56
      %p67 = scmp.eq.s32.totalorder %s35, 0
      %p68 = por %p66, %p67
      %p69 = scmp.ne.s32.totalorder %s55, %s56
      %p70 = scmp.eq.s32.totalorder %s36, 3
      %p71 = por %p69, %p70
      %p73 = scmp.ne.s32.totalorder %s56, %s72
      %p74 = scmp.eq.s32.totalorder %s36, 0
      %p75 = por %p73, %p74
      %s77 = sadd.s32 %s76, 1
      %p80 = scmp.eq.s32.totalorder %s30, 3
      %p81 = scmp.ne.s32.totalorder %s76, %s78
      %p82 = scmp.eq.s32.totalorder %s30, 0
      %p83 = por %p81, %p82
      %p84 = scmp.ne.s32.totalorder %s76, %s78
      %p85 = scmp.eq.s32.totalorder %s35, 3
      %p86 = por %p84, %p85
      %p87 = scmp.ne.s32.totalorder %s78, %s79
      %p88 = scmp.eq.s32.totalorder %s35, 0
      %p89 = por %p87, %p88
      %p90 = scmp.ne.s32.totalorder %s78, %s79
      %p91 = scmp.eq.s32.totalorder %s36, 3
      %p92 = por %p90, %p91
      %p94 = scmp.ne.s32.totalorder %s79, %s93
      %p95 = scmp.eq.s32.totalorder %s36, 0
      %p96 = por %p94, %p95
      %s98 = sadd.s32 %s97, 1
      %p101 = scmp.eq.s32.totalorder %s30, 3
      %p102 = scmp.ne.s32.totalorder %s97, %s99
      %p103 = scmp.eq.s32.totalorder %s30, 0
      %p104 = por %p102, %p103
      %p105 = scmp.ne.s32.totalorder %s97, %s99
      %p106 = scmp.eq.s32.totalorder %s35, 3
      %p107 = por %p105, %p106
      %p108 = scmp.ne.s32.totalorder %s99, %s100
      %p109 = scmp.eq.s32.totalorder %s35, 0
      %p110 = por %p108, %p109
      %p111 = scmp.ne.s32.totalorder %s99, %s100
      %p112 = scmp.eq.s32.totalorder %s36, 3
      %p113 = por %p111, %p112
      %p115 = scmp.ne.s32.totalorder %s100, %s114
      %p116 = scmp.eq.s32.totalorder %s36, 0
      %p117 = por %p115, %p116
      %s119 = sadd.s32 %s118, 1
      %p122 = scmp.eq.s32.totalorder %s30, 3
      %p123 = scmp.ne.s32.totalorder %s118, %s120
      %p124 = scmp.eq.s32.totalorder %s30, 0
      %p125 = por %p123, %p124
      %p126 = scmp.ne.s32.totalorder %s118, %s120
      %p127 = scmp.eq.s32.totalorder %s35, 3
      %p128 = por %p126, %p127
      %p129 = scmp.ne.s32.totalorder %s120, %s121
      %p130 = scmp.eq.s32.totalorder %s35, 0
      %p131 = por %p129, %p130
      %p132 = scmp.ne.s32.totalorder %s120, %s121
      %p133 = scmp.eq.s32.totalorder %s36, 3
      %p134 = por %p132, %p133
      %p136 = scmp.ne.s32.totalorder %s121, %s135
      %p137 = scmp.eq.s32.totalorder %s36, 0
      %p138 = por %p136, %p137
      %s140 = sadd.s32 %s139, 1
      %p143 = scmp.eq.s32.totalorder %s30, 3
      %p144 = scmp.ne.s32.totalorder %s139, %s141
      %p145 = scmp.eq.s32.totalorder %s30, 0
      %p146 = por %p144, %p145
      %p147 = scmp.ne.s32.totalorder %s139, %s141
      %p148 = scmp.eq.s32.totalorder %s35, 3
      %p149 = por %p147, %p148
      %p150 = scmp.ne.s32.totalorder %s141, %s142
      %p151 = scmp.eq.s32.totalorder %s35, 0
      %p152 = por %p150, %p151
      %p153 = scmp.ne.s32.totalorder %s141, %s142
      %p154 = scmp.eq.s32.totalorder %s36, 3
      %p155 = por %p153, %p154
      %p157 = scmp.ne.s32.totalorder %s142, %s156
      %p158 = scmp.eq.s32.totalorder %s36, 0
      %p159 = por %p157, %p158
      %s161 = sadd.s32 %s160, 1
      %p164 = scmp.eq.s32.totalorder %s30, 3
      %p165 = scmp.ne.s32.totalorder %s160, %s162
      %p166 = scmp.eq.s32.totalorder %s30, 0
      %p167 = por %p165, %p166
      %p168 = scmp.ne.s32.totalorder %s160, %s162
      %p169 = scmp.eq.s32.totalorder %s35, 3
      %p170 = por %p168, %p169
      %p171 = scmp.ne.s32.totalorder %s162, %s163
      %p172 = scmp.eq.s32.totalorder %s35, 0
      %p173 = por %p171, %p172
      %p174 = scmp.ne.s32.totalorder %s162, %s163
      %p175 = scmp.eq.s32.totalorder %s36, 3
      %p176 = por %p174, %p175
      %p178 = scmp.ne.s32.totalorder %s163, %s177
      %p179 = scmp.eq.s32.totalorder %s36, 0
      %p180 = por %p178, %p179
      %s182 = sadd.s32 %s181, 1
      %p185 = scmp.eq.s32.totalorder %s30, 3
      %p186 = scmp.ne.s32.totalorder %s181, %s183
      %p187 = scmp.eq.s32.totalorder %s30, 0
      %p188 = por %p186, %p187
      %p189 = scmp.ne.s32.totalorder %s181, %s183
      %p190 = scmp.eq.s32.totalorder %s35, 3
      %p191 = por %p189, %p190
      %p192 = scmp.ne.s32.totalorder %s183, %s184
      %p193 = scmp.eq.s32.totalorder %s35, 0
      %p194 = por %p192, %p193
      %p195 = scmp.ne.s32.totalorder %s183, %s184
      %p196 = scmp.eq.s32.totalorder %s36, 3
      %p197 = por %p195, %p196
      %p199 = scmp.ne.s32.totalorder %s184, %s198
      %p200 = scmp.eq.s32.totalorder %s36, 0
      %p201 = por %p199, %p200
      %s202 = ssub.s32 %s38, %s45
      %p203 = scmp.eq.s32.totalorder %s202, 0
      %s205 = sadd.s32 %s204, 1
      %s206 = scalar_select %p203, %s204, %s205
      %p209 = pneg %p203
      %p210 = scmp.eq.s32.totalorder %s30, 3
      %p211 = por %p209, %p210
      %p212 = scmp.ne.s32.totalorder %s204, %s207
      %p213 = scmp.eq.s32.totalorder %s30, 0
      %p214 = por %p212, %p213
      %p215 = scmp.ne.s32.totalorder %s204, %s207
      %p216 = scmp.eq.s32.totalorder %s35, 3
      %p217 = por %p215, %p216
      %p218 = scmp.ne.s32.totalorder %s207, %s208
      %p219 = scmp.eq.s32.totalorder %s35, 0
      %p220 = por %p218, %p219
      %p221 = scmp.ne.s32.totalorder %s207, %s208
      %p222 = scmp.eq.s32.totalorder %s36, 3
      %p223 = por %p221, %p222
      %p225 = scmp.ne.s32.totalorder %s208, %s224
      %p226 = scmp.eq.s32.totalorder %s36, 0
      %p227 = por %p225, %p226
      %s228 = ssub.s32 %s38, %s45
      %p229 = scmp.eq.s32.totalorder %s228, 0
      %s231 = sadd.s32 %s230, 1
      %s232 = scalar_select %p229, %s230, %s231
      %p235 = pneg %p229
      %p236 = scmp.eq.s32.totalorder %s30, 3
      %p237 = por %p235, %p236
      %p238 = scmp.ne.s32.totalorder %s230, %s233
      %p239 = scmp.eq.s32.totalorder %s30, 0
      %p240 = por %p238, %p239
      %p241 = scmp.ne.s32.totalorder %s230, %s233
      %p242 = scmp.eq.s32.totalorder %s35, 3
      %p243 = por %p241, %p242
      %p244 = scmp.ne.s32.totalorder %s233, %s234
      %p245 = scmp.eq.s32.totalorder %s35, 0
      %p246 = por %p244, %p245
      %p247 = scmp.ne.s32.totalorder %s233, %s234
      %p248 = scmp.eq.s32.totalorder %s36, 3
      %p249 = por %p247, %p248
      %p251 = scmp.ne.s32.totalorder %s234, %s250
      %p252 = scmp.eq.s32.totalorder %s36, 0
      %p253 = por %p251, %p252
      %s254 = ssub.s32 %s38, %s45
      %p255 = scmp.eq.s32.totalorder %s254, 0
      %s257 = sadd.s32 %s256, 1
      %s258 = scalar_select %p255, %s256, %s257
      %p261 = pneg %p255
      %p262 = scmp.eq.s32.totalorder %s30, 3
      %p263 = por %p261, %p262
      %p264 = scmp.ne.s32.totalorder %s256, %s259
      %p265 = scmp.eq.s32.totalorder %s30, 0
      %p266 = por %p264, %p265
      %p267 = scmp.ne.s32.totalorder %s256, %s259
      %p268 = scmp.eq.s32.totalorder %s35, 3
      %p269 = por %p267, %p268
      %p270 = scmp.ne.s32.totalorder %s259, %s260
      %p271 = scmp.eq.s32.totalorder %s35, 0
      %p272 = por %p270, %p271
      %p273 = scmp.ne.s32.totalorder %s259, %s260
      %p274 = scmp.eq.s32.totalorder %s36, 3
      %p275 = por %p273, %p274
      %p277 = scmp.ne.s32.totalorder %s260, %s276
      %p278 = scmp.eq.s32.totalorder %s36, 0
      %p279 = por %p277, %p278
      %s280 = ssub.s32 %s38, %s45
      %p281 = scmp.eq.s32.totalorder %s280, 0
      %s283 = sadd.s32 %s282, 1
      %s284 = scalar_select %p281, %s282, %s283
      %p287 = pneg %p281
      %p288 = scmp.eq.s32.totalorder %s30, 3
      %p289 = por %p287, %p288
      %p290 = scmp.ne.s32.totalorder %s282, %s285
      %p291 = scmp.eq.s32.totalorder %s30, 0
      %p292 = por %p290, %p291
      %p293 = scmp.ne.s32.totalorder %s282, %s285
      %p294 = scmp.eq.s32.totalorder %s35, 3
      %p295 = por %p293, %p294
      %p296 = scmp.ne.s32.totalorder %s285, %s286
      %p297 = scmp.eq.s32.totalorder %s35, 0
      %p298 = por %p296, %p297
      %p299 = scmp.ne.s32.totalorder %s285, %s286
      %p300 = scmp.eq.s32.totalorder %s36, 3
      %p301 = por %p299, %p300
      %p303 = scmp.ne.s32.totalorder %s286, %s302
      %p304 = scmp.eq.s32.totalorder %s36, 0
      %p305 = por %p303, %p304
      %s306 = ssub.s32 %s38, %s45
      %p307 = scmp.eq.s32.totalorder %s306, 0
      %s309 = sadd.s32 %s308, 1
      %s310 = scalar_select %p307, %s308, %s309
      %p313 = pneg %p307
      %p314 = scmp.eq.s32.totalorder %s30, 3
      %p315 = por %p313, %p314
      %p316 = scmp.ne.s32.totalorder %s308, %s311
      %p317 = scmp.eq.s32.totalorder %s30, 0
      %p318 = por %p316, %p317
      %p319 = scmp.ne.s32.totalorder %s308, %s311
      %p320 = scmp.eq.s32.totalorder %s35, 3
      %p321 = por %p319, %p320
      %p322 = scmp.ne.s32.totalorder %s311, %s312
      %p323 = scmp.eq.s32.totalorder %s35, 0
      %p324 = por %p322, %p323
      %p325 = scmp.ne.s32.totalorder %s311, %s312
      %p326 = scmp.eq.s32.totalorder %s36, 3
      %p327 = por %p325, %p326
      %p329 = scmp.ne.s32.totalorder %s312, %s328
      %p330 = scmp.eq.s32.totalorder %s36, 0
      %p331 = por %p329, %p330
      %s332 = ssub.s32 %s38, %s45
      %p333 = scmp.eq.s32.totalorder %s332, 0
      %s335 = sadd.s32 %s334, 1
      %s336 = scalar_select %p333, %s334, %s335
      %p339 = pneg %p333
      %p340 = scmp.eq.s32.totalorder %s30, 3
      %p341 = por %p339, %p340
      %p342 = scmp.ne.s32.totalorder %s334, %s337
      %p343 = scmp.eq.s32.totalorder %s30, 0
      %p344 = por %p342, %p343
      %p345 = scmp.ne.s32.totalorder %s334, %s337
      %p346 = scmp.eq.s32.totalorder %s35, 3
      %p347 = por %p345, %p346
      %p348 = scmp.ne.s32.totalorder %s337, %s338
      %p349 = scmp.eq.s32.totalorder %s35, 0
      %p350 = por %p348, %p349
      %p351 = scmp.ne.s32.totalorder %s337, %s338
      %p352 = scmp.eq.s32.totalorder %s36, 3
      %p353 = por %p351, %p352
      %p355 = scmp.ne.s32.totalorder %s338, %s354
      %p356 = scmp.eq.s32.totalorder %s36, 0
      %p357 = por %p355, %p356
      %s358 = ssub.s32 %s38, %s45
      %p359 = scmp.eq.s32.totalorder %s358, 0
      %s361 = sadd.s32 %s360, 1
      %s362 = scalar_select %p359, %s360, %s361
      %p365 = pneg %p359
      %p366 = scmp.eq.s32.totalorder %s30, 3
      %p367 = por %p365, %p366
      %p368 = scmp.ne.s32.totalorder %s360, %s363
      %p369 = scmp.eq.s32.totalorder %s30, 0
      %p370 = por %p368, %p369
      %p371 = scmp.ne.s32.totalorder %s360, %s363
      %p372 = scmp.eq.s32.totalorder %s35, 3
      %p373 = por %p371, %p372
      %p374 = scmp.ne.s32.totalorder %s363, %s364
      %p375 = scmp.eq.s32.totalorder %s35, 0
      %p376 = por %p374, %p375
      %p377 = scmp.ne.s32.totalorder %s363, %s364
      %p378 = scmp.eq.s32.totalorder %s36, 3
      %p379 = por %p377, %p378
      %p381 = scmp.ne.s32.totalorder %s364, %s380
      %p382 = scmp.eq.s32.totalorder %s36, 0
      %p383 = por %p381, %p382
      %s384 = ssub.s32 %s38, %s45
      %p385 = scmp.eq.s32.totalorder %s384, 0
      %s387 = sadd.s32 %s386, 1
      %s388 = scalar_select %p385, %s386, %s387
      %p391 = pneg %p385
      %p392 = scmp.eq.s32.totalorder %s30, 3
      %p393 = por %p391, %p392
      %p394 = scmp.ne.s32.totalorder %s386, %s389
      %p395 = scmp.eq.s32.totalorder %s30, 0
      %p396 = por %p394, %p395
      %p397 = scmp.ne.s32.totalorder %s386, %s389
      %p398 = scmp.eq.s32.totalorder %s35, 3
      %p399 = por %p397, %p398
      %p400 = scmp.ne.s32.totalorder %s389, %s390
      %p401 = scmp.eq.s32.totalorder %s35, 0
      %p402 = por %p400, %p401
      %p403 = scmp.ne.s32.totalorder %s389, %s390
      %p404 = scmp.eq.s32.totalorder %s36, 3
      %p405 = por %p403, %p404
      %p407 = scmp.ne.s32.totalorder %s390, %s406
      %p408 = scmp.eq.s32.totalorder %s36, 0
      %p409 = por %p407, %p408
      %s410 = ssub.s32 %s38, %s45
      %p411 = scmp.eq.s32.totalorder %s410, 0
      %s413 = sadd.s32 %s412, 1
      %s414 = scalar_select %p411, %s412, %s413
      %p417 = pneg %p411
      %p418 = scmp.eq.s32.totalorder %s30, 3
      %p419 = por %p417, %p418
      %p420 = scmp.ne.s32.totalorder %s412, %s415
      %p421 = scmp.eq.s32.totalorder %s30, 0
      %p422 = por %p420, %p421
      %p423 = scmp.ne.s32.totalorder %s412, %s415
      %p424 = scmp.eq.s32.totalorder %s35, 3
      %p425 = por %p423, %p424
      %p426 = scmp.ne.s32.totalorder %s415, %s416
      %p427 = scmp.eq.s32.totalorder %s35, 0
      %p428 = por %p426, %p427
      %p429 = scmp.ne.s32.totalorder %s415, %s416
      %p430 = scmp.eq.s32.totalorder %s36, 3
      %p431 = por %p429, %p430
      %p433 = scmp.ne.s32.totalorder %s416, %s432
      %p434 = scmp.eq.s32.totalorder %s36, 0
      %p435 = por %p433, %p434
      %s436 = ssub.s32 %s38, %s45
      %p437 = scmp.eq.s32.totalorder %s436, 0
      %s439 = sadd.s32 %s438, 1
      %s440 = scalar_select %p437, %s438, %s439
      %p443 = pneg %p437
      %p444 = scmp.eq.s32.totalorder %s30, 3
      %p445 = por %p443, %p444
      %p446 = scmp.ne.s32.totalorder %s438, %s441
      %p447 = scmp.eq.s32.totalorder %s30, 0
      %p448 = por %p446, %p447
      %p449 = scmp.ne.s32.totalorder %s438, %s441
      %p450 = scmp.eq.s32.totalorder %s35, 3
      %p451 = por %p449, %p450
      %p452 = scmp.ne.s32.totalorder %s441, %s442
      %p453 = scmp.eq.s32.totalorder %s35, 0
      %p454 = por %p452, %p453
      %p455 = scmp.ne.s32.totalorder %s441, %s442
      %p456 = scmp.eq.s32.totalorder %s36, 3
      %p457 = por %p455, %p456
      %p459 = scmp.ne.s32.totalorder %s442, %s458
      %p460 = scmp.eq.s32.totalorder %s36, 0
      %p461 = por %p459, %p460
      %s462 = ssub.s32 %s38, %s45
      %p463 = scmp.eq.s32.totalorder %s462, 0
      %s465 = sadd.s32 %s464, 1
      %s466 = scalar_select %p463, %s464, %s465
      %p469 = pneg %p463
      %p470 = scmp.eq.s32.totalorder %s30, 3
      %p471 = por %p469, %p470
      %p472 = scmp.ne.s32.totalorder %s464, %s467
      %p473 = scmp.eq.s32.totalorder %s30, 0
      %p474 = por %p472, %p473
      %p475 = scmp.ne.s32.totalorder %s464, %s467
      %p476 = scmp.eq.s32.totalorder %s35, 3
      %p477 = por %p475, %p476
      %p478 = scmp.ne.s32.totalorder %s467, %s468
      %p479 = scmp.eq.s32.totalorder %s35, 0
      %p480 = por %p478, %p479
      %p481 = scmp.ne.s32.totalorder %s467, %s468
      %p482 = scmp.eq.s32.totalorder %s36, 3
      %p483 = por %p481, %p482
      %p485 = scmp.ne.s32.totalorder %s468, %s484
      %p486 = scmp.eq.s32.totalorder %s36, 0
      %p487 = por %p485, %p486
      %s488 = ssub.s32 %s38, %s45
      %p489 = scmp.eq.s32.totalorder %s488, 0
      %s491 = sadd.s32 %s490, 1
      %s492 = scalar_select %p489, %s490, %s491
      %p495 = pneg %p489
      %p496 = scmp.eq.s32.totalorder %s30, 3
      %p497 = por %p495, %p496
      %p498 = scmp.ne.s32.totalorder %s490, %s493
      %p499 = scmp.eq.s32.totalorder %s30, 0
      %p500 = por %p498, %p499
      %p501 = scmp.ne.s32.totalorder %s490, %s493
      %p502 = scmp.eq.s32.totalorder %s35, 3
      %p503 = por %p501, %p502
      %p504 = scmp.ne.s32.totalorder %s493, %s494
      %p505 = scmp.eq.s32.totalorder %s35, 0
      %p506 = por %p504, %p505
      %p507 = scmp.ne.s32.totalorder %s493, %s494
      %p508 = scmp.eq.s32.totalorder %s36, 3
      %p509 = por %p507, %p508
      %p511 = scmp.ne.s32.totalorder %s494, %s510
      %p512 = scmp.eq.s32.totalorder %s36, 0
      %p513 = por %p511, %p512
      %s515 = sadd.s32 %s514, 1
      %p518 = scmp.eq.s32.totalorder %s30, 3
      %p519 = scmp.ne.s32.totalorder %s514, %s516
      %p520 = scmp.eq.s32.totalorder %s30, 0
      %p521 = por %p519, %p520
      %p522 = scmp.ne.s32.totalorder %s514, %s516
      %p523 = scmp.eq.s32.totalorder %s35, 3
      %p524 = por %p522, %p523
      %p525 = scmp.ne.s32.totalorder %s516, %s517
      %p526 = scmp.eq.s32.totalorder %s35, 0
      %p527 = por %p525, %p526
      %p528 = scmp.ne.s32.totalorder %s516, %s517
      %p529 = scmp.eq.s32.totalorder %s36, 3
      %p530 = por %p528, %p529
      %p532 = scmp.ne.s32.totalorder %s517, %s531
      %p533 = scmp.eq.s32.totalorder %s36, 0
      %p534 = por %p532, %p533
      %s536 = sadd.s32 %s535, 1
      %p539 = scmp.eq.s32.totalorder %s30, 3
      %p540 = scmp.ne.s32.totalorder %s535, %s537
      %p541 = scmp.eq.s32.totalorder %s30, 0
      %p542 = por %p540, %p541
      %p543 = scmp.ne.s32.totalorder %s535, %s537
      %p544 = scmp.eq.s32.totalorder %s35, 3
      %p545 = por %p543, %p544
      %p546 = scmp.ne.s32.totalorder %s537, %s538
      %p547 = scmp.eq.s32.totalorder %s35, 0
      %p548 = por %p546, %p547
      %p549 = scmp.ne.s32.totalorder %s537, %s538
      %p550 = scmp.eq.s32.totalorder %s36, 3
      %p551 = por %p549, %p550
      %p553 = scmp.ne.s32.totalorder %s538, %s552
      %p554 = scmp.eq.s32.totalorder %s36, 0
      %p555 = por %p553, %p554
      %s556 = ssub.s32 %s37, %s49
      %p557 = scmp.eq.s32.totalorder %s556, 0
      %s559 = sadd.s32 %s558, 1
      %s560 = scalar_select %p557, %s558, %s559
      %p563 = pneg %p557
      %p564 = scmp.eq.s32.totalorder %s30, 3
      %p565 = por %p563, %p564
      %p566 = scmp.ne.s32.totalorder %s558, %s561
      %p567 = scmp.eq.s32.totalorder %s30, 0
      %p568 = por %p566, %p567
      %p569 = scmp.ne.s32.totalorder %s558, %s561
      %p570 = scmp.eq.s32.totalorder %s35, 3
      %p571 = por %p569, %p570
      %p572 = scmp.ne.s32.totalorder %s561, %s562
      %p573 = scmp.eq.s32.totalorder %s35, 0
      %p574 = por %p572, %p573
      %p575 = scmp.ne.s32.totalorder %s561, %s562
      %p576 = scmp.eq.s32.totalorder %s36, 3
      %p577 = por %p575, %p576
      %p579 = scmp.ne.s32.totalorder %s562, %s578
      %p580 = scmp.eq.s32.totalorder %s36, 0
      %p581 = por %p579, %p580
      %p582 = scmp.le.s32.totalorder 1, %s30
      %p583 = scmp.lt.s32.totalorder %s30, 5
      %p584 = pnand %p582, %p583
      %p585 = pneg %p584
      // Predicated region
      $region9: #{simple_vit_forward.1} parent=5 // pred_check
        _
      $region10: #{simple_vit_forward.1} parent=5 // pred_check_branch
        %587 = sbr.rel (%p584) target = $region12
      $region11: #{simple_vit_forward.1} parent=5 // pred_region
        %s588 = ssub.s32 %s30, 1
        // Predicated region
        $region13: #{simple_vit_forward.1} parent=11 // pred_check
          %p589 = pneg %p89
        $region14: #{simple_vit_forward.1} parent=11 // pred_check_branch
          %591 = sbr.rel (%p589) target = $region16
        $region15: #{simple_vit_forward.1} parent=11 // pred_region
          _
        $region16: #{simple_vit_forward.1} parent=11 // pred_fallthru
          _
        // Predicated region
        $region17: #{simple_vit_forward.1} parent=11 // pred_check
          %p592 = pneg %p110
        $region18: #{simple_vit_forward.1} parent=11 // pred_check_branch
          %594 = sbr.rel (%p592) target = $region20
        $region19: #{simple_vit_forward.1} parent=11 // pred_region
          _
        $region20: #{simple_vit_forward.1} parent=11 // pred_fallthru
          _
        // Predicated region
        $region21: #{simple_vit_forward.1} parent=11 // pred_check
          %p595 = pneg %p131
        $region22: #{simple_vit_forward.1} parent=11 // pred_check_branch
          %597 = sbr.rel (%p595) target = $region24
        $region23: #{simple_vit_forward.1} parent=11 // pred_region
          _
        $region24: #{simple_vit_forward.1} parent=11 // pred_fallthru
          _
        // Predicated region
        $region25: #{simple_vit_forward.1} parent=11 // pred_check
          %p598 = pneg %p152
        $region26: #{simple_vit_forward.1} parent=11 // pred_check_branch
          %600 = sbr.rel (%p598) target = $region28
        $region27: #{simple_vit_forward.1} parent=11 // pred_region
          _
        $region28: #{simple_vit_forward.1} parent=11 // pred_fallthru
          _
        // Predicated region
        $region29: #{simple_vit_forward.1} parent=11 // pred_check
          %p601 = pneg %p173
        $region30: #{simple_vit_forward.1} parent=11 // pred_check_branch
          %603 = sbr.rel (%p601) target = $region32
        $region31: #{simple_vit_forward.1} parent=11 // pred_region
          _
        $region32: #{simple_vit_forward.1} parent=11 // pred_fallthru
          _
        // Predicated region
        $region33: #{simple_vit_forward.1} parent=11 // pred_check
          %p604 = pneg %p194
        $region34: #{simple_vit_forward.1} parent=11 // pred_check_branch
          %606 = sbr.rel (%p604) target = $region36
        $region35: #{simple_vit_forward.1} parent=11 // pred_region
          _
        $region36: #{simple_vit_forward.1} parent=11 // pred_fallthru
          _
        // Predicated region
        $region37: #{simple_vit_forward.1} parent=11 // pred_check
          %p607 = pneg %p527
        $region38: #{simple_vit_forward.1} parent=11 // pred_check_branch
          %609 = sbr.rel (%p607) target = $region40
        $region39: #{simple_vit_forward.1} parent=11 // pred_region
          _
        $region40: #{simple_vit_forward.1} parent=11 // pred_fallthru
          _
        // Predicated region
        $region41: #{simple_vit_forward.1} parent=11 // pred_check
          %p610 = pneg %p548
        $region42: #{simple_vit_forward.1} parent=11 // pred_check_branch
          %612 = sbr.rel (%p610) target = $region44
        $region43: #{simple_vit_forward.1} parent=11 // pred_region
          _
        $region44: #{simple_vit_forward.1} parent=11 // pred_fallthru
          _
      $region12: #{simple_vit_forward.1} parent=5 // pred_fallthru
        _
      %p613 = scmp.lt.s32.totalorder %s30, 4
      // Predicated region
      $region45: #{simple_vit_forward.1} parent=5 // pred_check
        %p614 = pneg %p613
      $region46: #{simple_vit_forward.1} parent=5 // pred_check_branch
        %616 = sbr.rel (%p614) target = $region48
      $region47: #{simple_vit_forward.1} parent=5 // pred_region
        // Predicated region
        $region49: #{simple_vit_forward.1} parent=47 // pred_check
          %p617 = pneg %p62
        $region50: #{simple_vit_forward.1} parent=47 // pred_check_branch
          %619 = sbr.rel (%p617) target = $region52
        $region51: #{simple_vit_forward.1} parent=47 // pred_region
          %p620 = scmp.lt.s32.totalorder %s37, 1
          %s621 = scalar_select %p620, %s37, 1
          %s622 = smul.addr %s621, 4
          %s623 = scalar_lea.vmem %s0, %s622
        $region52: #{simple_vit_forward.1} parent=47 // pred_fallthru
          _
        // Predicated region
        $region53: #{simple_vit_forward.1} parent=47 // pred_check
          %p624 = pneg %p214
        $region54: #{simple_vit_forward.1} parent=47 // pred_check_branch
          %626 = sbr.rel (%p624) target = $region56
        $region55: #{simple_vit_forward.1} parent=47 // pred_region
          %p627 = scmp.lt.s32.totalorder %s38, 1
          %s628 = scalar_select %p627, %s38, 1
          %s629 = scalar_lea.vmem %s7, %s628
        $region56: #{simple_vit_forward.1} parent=47 // pred_fallthru
          _
        // Predicated region
        $region57: #{simple_vit_forward.1} parent=47 // pred_check
          %p630 = pneg %p240
        $region58: #{simple_vit_forward.1} parent=47 // pred_check_branch
          %632 = sbr.rel (%p630) target = $region60
        $region59: #{simple_vit_forward.1} parent=47 // pred_region
          %p633 = scmp.lt.s32.totalorder %s38, 1
          %s634 = scalar_select %p633, %s38, 1
          %s635 = scalar_lea.vmem %s8, %s634
        $region60: #{simple_vit_forward.1} parent=47 // pred_fallthru
          _
        // Predicated region
        $region61: #{simple_vit_forward.1} parent=47 // pred_check
          %p636 = pneg %p266
        $region62: #{simple_vit_forward.1} parent=47 // pred_check_branch
          %638 = sbr.rel (%p636) target = $region64
        $region63: #{simple_vit_forward.1} parent=47 // pred_region
          %p639 = scmp.lt.s32.totalorder %s38, 1
          %s640 = scalar_select %p639, %s38, 1
          %s641 = smul.addr %s640, 64
          %s642 = smul.addr %s641, 4
          %s643 = scalar_lea.vmem %s9, %s642
        $region64: #{simple_vit_forward.1} parent=47 // pred_fallthru
          _
        // Predicated region
        $region65: #{simple_vit_forward.1} parent=47 // pred_check
          %p644 = pneg %p292
        $region66: #{simple_vit_forward.1} parent=47 // pred_check_branch
          %646 = sbr.rel (%p644) target = $region68
        $region67: #{simple_vit_forward.1} parent=47 // pred_region
          %p647 = scmp.lt.s32.totalorder %s38, 1
          %s648 = scalar_select %p647, %s38, 1
          %s649 = smul.addr %s648, 64
          %s650 = smul.addr %s649, 4
          %s651 = scalar_lea.vmem %s10, %s650
        $region68: #{simple_vit_forward.1} parent=47 // pred_fallthru
          _
        // Predicated region
        $region69: #{simple_vit_forward.1} parent=47 // pred_check
          %p652 = pneg %p318
        $region70: #{simple_vit_forward.1} parent=47 // pred_check_branch
          %654 = sbr.rel (%p652) target = $region72
        $region71: #{simple_vit_forward.1} parent=47 // pred_region
          %p655 = scmp.lt.s32.totalorder %s38, 1
          %s656 = scalar_select %p655, %s38, 1
          %s657 = smul.addr %s656, 64
          %s658 = smul.addr %s657, 4
          %s659 = scalar_lea.vmem %s11, %s658
        $region72: #{simple_vit_forward.1} parent=47 // pred_fallthru
          _
        // Predicated region
        $region73: #{simple_vit_forward.1} parent=47 // pred_check
          %p660 = pneg %p344
        $region74: #{simple_vit_forward.1} parent=47 // pred_check_branch
          %662 = sbr.rel (%p660) target = $region76
        $region75: #{simple_vit_forward.1} parent=47 // pred_region
          %p663 = scmp.lt.s32.totalorder %s38, 1
          %s664 = scalar_select %p663, %s38, 1
          %s665 = smul.addr %s664, 4
          %s666 = smul.addr %s665, 4
          %s667 = scalar_lea.vmem %s12, %s666
        $region76: #{simple_vit_forward.1} parent=47 // pred_fallthru
          _
        // Predicated region
        $region77: #{simple_vit_forward.1} parent=47 // pred_check
          %p668 = pneg %p370
        $region78: #{simple_vit_forward.1} parent=47 // pred_check_branch
          %670 = sbr.rel (%p668) target = $region80
        $region79: #{simple_vit_forward.1} parent=47 // pred_region
          %p671 = scmp.lt.s32.totalorder %s38, 1
          %s672 = scalar_select %p671, %s38, 1
          %s673 = scalar_lea.vmem %s13, %s672
        $region80: #{simple_vit_forward.1} parent=47 // pred_fallthru
          _
        // Predicated region
        $region81: #{simple_vit_forward.1} parent=47 // pred_check
          %p674 = pneg %p396
        $region82: #{simple_vit_forward.1} parent=47 // pred_check_branch
          %676 = sbr.rel (%p674) target = $region84
        $region83: #{simple_vit_forward.1} parent=47 // pred_region
          %p677 = scmp.lt.s32.totalorder %s38, 1
          %s678 = scalar_select %p677, %s38, 1
          %s679 = scalar_lea.vmem %s14, %s678
        $region84: #{simple_vit_forward.1} parent=47 // pred_fallthru
          _
        // Predicated region
        $region85: #{simple_vit_forward.1} parent=47 // pred_check
          %p680 = pneg %p422
        $region86: #{simple_vit_forward.1} parent=47 // pred_check_branch
          %682 = sbr.rel (%p680) target = $region88
        $region87: #{simple_vit_forward.1} parent=47 // pred_region
          %p683 = scmp.lt.s32.totalorder %s38, 1
          %s684 = scalar_select %p683, %s38, 1
          %s685 = smul.addr %s684, 16
          %s686 = smul.addr %s685, 4
          %s687 = scalar_lea.vmem %s15, %s686
        $region88: #{simple_vit_forward.1} parent=47 // pred_fallthru
          _
        // Predicated region
        $region89: #{simple_vit_forward.1} parent=47 // pred_check
          %p688 = pneg %p448
        $region90: #{simple_vit_forward.1} parent=47 // pred_check_branch
          %690 = sbr.rel (%p688) target = $region92
        $region91: #{simple_vit_forward.1} parent=47 // pred_region
          %p691 = scmp.lt.s32.totalorder %s38, 1
          %s692 = scalar_select %p691, %s38, 1
          %s693 = scalar_lea.vmem %s16, %s692
        $region92: #{simple_vit_forward.1} parent=47 // pred_fallthru
          _
        // Predicated region
        $region93: #{simple_vit_forward.1} parent=47 // pred_check
          %p694 = pneg %p474
        $region94: #{simple_vit_forward.1} parent=47 // pred_check_branch
          %696 = sbr.rel (%p694) target = $region96
        $region95: #{simple_vit_forward.1} parent=47 // pred_region
          %p697 = scmp.lt.s32.totalorder %s38, 1
          %s698 = scalar_select %p697, %s38, 1
          %s699 = smul.addr %s698, 16
          %s700 = smul.addr %s699, 4
          %s701 = scalar_lea.vmem %s17, %s700
        $region96: #{simple_vit_forward.1} parent=47 // pred_fallthru
          _
        // Predicated region
        $region97: #{simple_vit_forward.1} parent=47 // pred_check
          %p702 = pneg %p500
        $region98: #{simple_vit_forward.1} parent=47 // pred_check_branch
          %704 = sbr.rel (%p702) target = $region100
        $region99: #{simple_vit_forward.1} parent=47 // pred_region
          %p705 = scmp.lt.s32.totalorder %s38, 1
          %s706 = scalar_select %p705, %s38, 1
          %s707 = scalar_lea.vmem %s18, %s706
        $region100: #{simple_vit_forward.1} parent=47 // pred_fallthru
          _
      $region48: #{simple_vit_forward.1} parent=5 // pred_fallthru
        _
      %p708 = scmp.le.s32.totalorder 1, %s30
      %p709 = scmp.lt.s32.totalorder %s30, 5
      %p710 = pnand %p708, %p709
      %p711 = pneg %p710
      // Predicated region
      $region101: #{simple_vit_forward.1} parent=5 // pred_check
        _
      $region102: #{simple_vit_forward.1} parent=5 // pred_check_branch
        %713 = sbr.rel (%p710) target = $region104
      $region103: #{simple_vit_forward.1} parent=5 // pred_region
        %s714 = ssub.s32 %s30, 1
        %p715 = scmp.lt.s32.totalorder %s39, 1
        %s716 = scalar_select %p715, %s39, 1
        %s717 = smul.addr %s716, 4
        %s718 = scalar_lea.vmem %s0, %s717
        %p719 = pneg %p68
        %p720 = pneg %p65
        %p721 = pneg %p89
        %p722 = pneg %p86
        %p723 = pneg %p110
        %p724 = pneg %p107
        %p725 = pneg %p131
        %p726 = pneg %p128
        %p727 = pneg %p152
        %p728 = pneg %p149
        %p729 = pneg %p173
        %p730 = pneg %p170
        %p731 = pneg %p194
        %p732 = pneg %p191
        %p733 = scmp.lt.s32.totalorder %s40, 1
        %s734 = scalar_select %p733, %s40, 1
        %s735 = scalar_lea.vmem %s7, %s734
        %p736 = pneg %p220
        %p737 = pneg %p217
        %p738 = scmp.lt.s32.totalorder %s40, 1
        %s739 = scalar_select %p738, %s40, 1
        %s740 = scalar_lea.vmem %s8, %s739
        %p741 = pneg %p246
        %p742 = pneg %p243
        %p743 = scmp.lt.s32.totalorder %s40, 1
        %s744 = scalar_select %p743, %s40, 1
        %s745 = smul.addr %s744, 64
        %s746 = smul.addr %s745, 4
        %s747 = scalar_lea.vmem %s9, %s746
        %p748 = pneg %p272
        %p749 = pneg %p269
        %p750 = scmp.lt.s32.totalorder %s40, 1
        %s751 = scalar_select %p750, %s40, 1
        %s752 = smul.addr %s751, 64
        %s753 = smul.addr %s752, 4
        %s754 = scalar_lea.vmem %s10, %s753
        %p755 = pneg %p298
        %p756 = pneg %p295
        %p757 = scmp.lt.s32.totalorder %s40, 1
        %s758 = scalar_select %p757, %s40, 1
        %s759 = smul.addr %s758, 64
        %s760 = smul.addr %s759, 4
        %s761 = scalar_lea.vmem %s11, %s760
        %p762 = pneg %p324
        %p763 = pneg %p321
        %p764 = scmp.lt.s32.totalorder %s40, 1
        %s765 = scalar_select %p764, %s40, 1
        %s766 = smul.addr %s765, 4
        %s767 = smul.addr %s766, 4
        %s768 = scalar_lea.vmem %s12, %s767
        %p769 = pneg %p350
        %p770 = pneg %p347
        %p771 = scmp.lt.s32.totalorder %s40, 1
        %s772 = scalar_select %p771, %s40, 1
        %s773 = scalar_lea.vmem %s13, %s772
        %p774 = pneg %p376
        %p775 = pneg %p373
        %p776 = scmp.lt.s32.totalorder %s40, 1
        %s777 = scalar_select %p776, %s40, 1
        %s778 = scalar_lea.vmem %s14, %s777
        %p779 = pneg %p402
        %p780 = pneg %p399
        %p781 = scmp.lt.s32.totalorder %s40, 1
        %s782 = scalar_select %p781, %s40, 1
        %s783 = smul.addr %s782, 16
        %s784 = smul.addr %s783, 4
        %s785 = scalar_lea.vmem %s15, %s784
        %p786 = pneg %p428
        %p787 = pneg %p425
        %p788 = scmp.lt.s32.totalorder %s40, 1
        %s789 = scalar_select %p788, %s40, 1
        %s790 = scalar_lea.vmem %s16, %s789
        %p791 = pneg %p454
        %p792 = pneg %p451
        %p793 = scmp.lt.s32.totalorder %s40, 1
        %s794 = scalar_select %p793, %s40, 1
        %s795 = smul.addr %s794, 16
        %s796 = smul.addr %s795, 4
        %s797 = scalar_lea.vmem %s17, %s796
        %p798 = pneg %p480
        %p799 = pneg %p477
        %p800 = scmp.lt.s32.totalorder %s40, 1
        %s801 = scalar_select %p800, %s40, 1
        %s802 = scalar_lea.vmem %s18, %s801
        %p803 = pneg %p506
        %p804 = pneg %p503
        %p805 = pneg %p527
        %p806 = pneg %p524
        %p807 = pneg %p548
        %p808 = pneg %p545
        %p809 = pneg %p574
        %p810 = pneg %p571
        %s811 = sand.u32 %s561, 1
        %s812 = scalar_lea.sflag [#allocation4], %s811
        %s813 = sand.u32 %s561, 1
        %s814 = smul.addr %s813, 4
        %s815 = scalar_lea.vmem [#allocation3], %s814
        %p816 = scmp.lt.s32.totalorder %s39, 1
        %s817 = scalar_select %p816, %s39, 1
        %s818 = smul.addr %s817, 4
        %s819 = scalar_lea.vmem %s0, %s818
        %p820 = scmp.lt.s32.totalorder %s40, 1
        %s821 = scalar_select %p820, %s40, 1
        %s822 = scalar_lea.vmem %s7, %s821
        %p823 = scmp.lt.s32.totalorder %s40, 1
        %s824 = scalar_select %p823, %s40, 1
        %s825 = scalar_lea.vmem %s8, %s824
        %p826 = scmp.lt.s32.totalorder %s40, 1
        %s827 = scalar_select %p826, %s40, 1
        %s828 = smul.addr %s827, 64
        %s829 = smul.addr %s828, 4
        %s830 = scalar_lea.vmem %s9, %s829
        %p831 = scmp.lt.s32.totalorder %s40, 1
        %s832 = scalar_select %p831, %s40, 1
        %s833 = smul.addr %s832, 64
        %s834 = smul.addr %s833, 4
        %s835 = scalar_lea.vmem %s10, %s834
        %p836 = scmp.lt.s32.totalorder %s40, 1
        %s837 = scalar_select %p836, %s40, 1
        %s838 = smul.addr %s837, 64
        %s839 = smul.addr %s838, 4
        %s840 = scalar_lea.vmem %s11, %s839
        %p841 = scmp.lt.s32.totalorder %s40, 1
        %s842 = scalar_select %p841, %s40, 1
        %s843 = smul.addr %s842, 4
        %s844 = smul.addr %s843, 4
        %s845 = scalar_lea.vmem %s12, %s844
        %p846 = scmp.lt.s32.totalorder %s40, 1
        %s847 = scalar_select %p846, %s40, 1
        %s848 = scalar_lea.vmem %s13, %s847
        %p849 = scmp.lt.s32.totalorder %s40, 1
        %s850 = scalar_select %p849, %s40, 1
        %s851 = scalar_lea.vmem %s14, %s850
        %p852 = scmp.lt.s32.totalorder %s40, 1
        %s853 = scalar_select %p852, %s40, 1
        %s854 = smul.addr %s853, 16
        %s855 = smul.addr %s854, 4
        %s856 = scalar_lea.vmem %s15, %s855
        %p857 = scmp.lt.s32.totalorder %s40, 1
        %s858 = scalar_select %p857, %s40, 1
        %s859 = scalar_lea.vmem %s16, %s858
        %p860 = scmp.lt.s32.totalorder %s40, 1
        %s861 = scalar_select %p860, %s40, 1
        %s862 = smul.addr %s861, 16
        %s863 = smul.addr %s862, 4
        %s864 = scalar_lea.vmem %s17, %s863
        %p865 = scmp.lt.s32.totalorder %s40, 1
        %s866 = scalar_select %p865, %s40, 1
        %s867 = scalar_lea.vmem %s18, %s866
        %p869 = scmp.eq.s32.totalorder %s40, 0
        // Predicated region
        $region105: #{simple_vit_forward.1} parent=103 // pred_check
          %p870 = pneg %p869
        $region106: #{simple_vit_forward.1} parent=103 // pred_check_branch
          %872 = sbr.rel (%p870) target = $region108
        $region107: #{simple_vit_forward.1} parent=103 // pred_region
          %v873 = vld [vmem:[%s819] sm:$0xf]
          %v874 = vld [vmem:[%s1] sm:$0x1]
          %v875 = vld [vmem:[%s2] sm:$0x1]
          %vm876 = vcmask 1043456
          %v877 = vsel %vm876, %v873, 0.0
          %878 = vadd.xlane.f32.xlu0 %v877
          %v879 = vpop.xlane.xlu0 %878
          %v880 = vmul.f32 %v879, 0.015625
          %v881 = vmul.f32 %v873, %v873
          %v882 = vsel %vm876, %v881, 0.0
          %883 = vadd.xlane.f32.xlu0 %v882
          %v884 = vpop.xlane.xlu0 %883
          %v885 = vmul.f32 %v884, 0.015625
          %v886 = vmul.f32 %v880, %v880
          %v887 = vsub.f32 %v885, %v886
          %v888 = vsub.f32 %v873, %v880
          %v889 = vadd.f32 %v887, 1e-05
          %v890 = vrsqrt.pop %v889
          %v891 = vmul.f32 %v890, %v889
          %v892 = vmul.f32 %v891, %v890
          %v893 = vmul.f32 0.5, %v892
          %v894 = vsub.f32 1.5, %v893
          %v895 = vmul.f32 %v890, %v894
          %vm896 = vweird.f32 %v889
          %vm897 = vweird.f32 %v890
          %vm898 = vmor %vm896, %vm897
          %v899 = vsel %vm898, %v890, %v895
          %v900 = vmul.f32 %v888, %v899
          %v902 = vperm.slane %v874, 0
          %v904 = vmul.f32 %v900, %v902
          %v906 = vperm.slane %v875, 0
          %v908 = vadd.f32 %v904, %v906
          %v909 = vpack.c.bf16 %v908, %v908
          %v910 = vld [vmem:[%s3] sm:$0xf]
          %v911 = vld [vmem:[%s3 + $0x4] sm:$0xf]
          %v912 = vld [vmem:[%s3 + $0x8] sm:$0xf]
          %v913 = vld [vmem:[%s3 + $0xc] sm:$0xf]
          %v914 = vld [vmem:[%s3 + $0x10] sm:$0xf]
          %v915 = vld [vmem:[%s3 + $0x14] sm:$0xf]
          %v916 = vld [vmem:[%s3 + $0x18] sm:$0xf]
          %v917 = vld [vmem:[%s3 + $0x1c] sm:$0xf]
          %v918 = vld [vmem:[%s3 + $0x20] sm:$0xf]
          %v919 = vld [vmem:[%s3 + $0x24] sm:$0xf]
          %v920 = vld [vmem:[%s3 + $0x28] sm:$0xf]
          %v921 = vld [vmem:[%s3 + $0x2c] sm:$0xf]
          %v922 = vld [vmem:[%s3 + $0x30] sm:$0xf]
          %v923 = vld [vmem:[%s3 + $0x34] sm:$0xf]
          %v924 = vld [vmem:[%s3 + $0x38] sm:$0xf]
          %v925 = vld [vmem:[%s3 + $0x3c] sm:$0xf]
          %v926 = vld [vmem:[%s4] sm:$0x1]
          %v928 = vperm.slane %v926, 0
          %v946 = vunpack.c.l.b16 %v910
          %v947 = vunpack.c.l.b16 %v911
          %v948 = vunpack.c.l.b16 %v912
          %v949 = vunpack.c.l.b16 %v913
          %v950 = vunpack.c.l.b16 %v914
          %v951 = vunpack.c.l.b16 %v915
          %v952 = vunpack.c.l.b16 %v916
          %v953 = vunpack.c.l.b16 %v917
          %v954 = vunpack.c.l.b16 %v918
          %v955 = vunpack.c.l.b16 %v919
          %v956 = vunpack.c.l.b16 %v920
          %v957 = vunpack.c.l.b16 %v921
          %v958 = vunpack.c.l.b16 %v922
          %v959 = vunpack.c.l.b16 %v923
          %v960 = vunpack.c.l.b16 %v924
          %v961 = vunpack.c.l.b16 %v925
          %v962 = vpack.c.b16 %v947, %v946
          %v963 = vpack.c.b16 %v949, %v948
          %v964 = vpack.c.b16 %v951, %v950
          %v965 = vpack.c.b16 %v953, %v952
          %v966 = vpack.c.b16 %v955, %v954
          %v967 = vpack.c.b16 %v957, %v956
          %v968 = vpack.c.b16 %v959, %v958
          %v969 = vpack.c.b16 %v961, %v960
          %978 = vmatpush.bf16.msra.mxu0 %v969
          %979 = vmatpush.bf16.msra.mxu0 %v968
          %980 = vmatpush.bf16.msra.mxu0 %v967
          %981 = vmatpush.bf16.msra.mxu0 %v966
          %982 = vmatpush.bf16.msra.mxu0 %v965
          %983 = vmatpush.bf16.msra.mxu0 %v964
          %984 = vmatpush.bf16.msra.mxu0 %v963
          %985 = vmatpush.bf16.msra.mxu0 %v962
          %986 = vmatmul.bf16.gmra.mxu0 %v909
          %v987 = vpop.f32.mrf.mxu0
          %v988 = vadd.f32 %v928, %v987
          %v989 = vpop.f32.mrf.mxu0
          %990 = vdwg.mxu0
          %v991 = vld [vmem:[%s5] sm:$0x1]
          %v992 = vld [vmem:[%s6] sm:$0x1]
          %v993 = vsel %vm876, %v988, 0.0
          %994 = vadd.xlane.f32.xlu0 %v993
          %v995 = vpop.xlane.xlu0 %994
          %v996 = vmul.f32 %v995, 0.03125
          %v997 = vmul.f32 %v988, %v988
          %v998 = vsel %vm876, %v997, 0.0
          %999 = vadd.xlane.f32.xlu0 %v998
          %v1000 = vpop.xlane.xlu0 %999
          %v1001 = vmul.f32 %v1000, 0.03125
          %v1002 = vmul.f32 %v996, %v996
          %v1003 = vsub.f32 %v1001, %v1002
          %v1004 = vsub.f32 %v988, %v996
          %v1005 = vadd.f32 %v1003, 1e-05
          %v1006 = vrsqrt.pop %v1005
          %v1007 = vmul.f32 %v1006, %v1005
          %v1008 = vmul.f32 %v1007, %v1006
          %v1009 = vmul.f32 0.5, %v1008
          %v1010 = vsub.f32 1.5, %v1009
          %v1011 = vmul.f32 %v1006, %v1010
          %vm1012 = vweird.f32 %v1005
          %vm1013 = vweird.f32 %v1006
          %vm1014 = vmor %vm1012, %vm1013
          %v1015 = vsel %vm1014, %v1006, %v1011
          %v1016 = vmul.f32 %v1004, %v1015
          %v1018 = vperm.slane %v991, 0
          %v1020 = vmul.f32 %v1016, %v1018
          %v1022 = vperm.slane %v992, 0
          %v1024 = vadd.f32 %v1020, %v1022
          %1025 = vst [vmem:[#allocation2] sm:$0xf] %v1024
        $region108: #{simple_vit_forward.1} parent=103 // pred_fallthru
          _
        %v1026 = vld [vmem:[#allocation2] sm:$0xf]
        %v1027 = vld [vmem:[%s822] sm:$0x1]
        %v1028 = vld [vmem:[%s825] sm:$0x1]
        %vm1029 = vcmask 1043456
        %v1030 = vsel %vm1029, %v1026, 0.0
        %1031 = vadd.xlane.f32.xlu0 %v1030
        %v1032 = vpop.xlane.xlu0 %1031
        %v1033 = vmul.f32 %v1032, 0.03125
        %v1034 = vmul.f32 %v1026, %v1026
        %v1035 = vsel %vm1029, %v1034, 0.0
        %1036 = vadd.xlane.f32.xlu0 %v1035
        %v1037 = vpop.xlane.xlu0 %1036
        %v1038 = vmul.f32 %v1037, 0.03125
        %v1039 = vmul.f32 %v1033, %v1033
        %v1040 = vsub.f32 %v1038, %v1039
        %v1041 = vsub.f32 %v1026, %v1033
        %v1042 = vadd.f32 %v1040, 1e-05
        %v1043 = vrsqrt.pop %v1042
        %v1044 = vmul.f32 %v1043, %v1042
        %v1045 = vmul.f32 %v1044, %v1043
        %v1046 = vmul.f32 0.5, %v1045
        %v1047 = vsub.f32 1.5, %v1046
        %v1048 = vmul.f32 %v1043, %v1047
        %vm1049 = vweird.f32 %v1042
        %vm1050 = vweird.f32 %v1043
        %vm1051 = vmor %vm1049, %vm1050
        %v1052 = vsel %vm1051, %v1043, %v1048
        %v1053 = vmul.f32 %v1041, %v1052
        %v1055 = vperm.slane %v1027, 0
        %v1057 = vmul.f32 %v1053, %v1055
        %v1059 = vperm.slane %v1028, 0
        %v1061 = vadd.f32 %v1057, %v1059
        %v1062 = vpack.c.bf16 %v1061, %v1061
        %v1063 = vld [vmem:[%s830] sm:$0xf]
        %v1064 = vld [vmem:[%s830 + $0x4] sm:$0xf]
        %v1065 = vld [vmem:[%s830 + $0x8] sm:$0xf]
        %v1066 = vld [vmem:[%s830 + $0xc] sm:$0xf]
        %v1067 = vld [vmem:[%s830 + $0x10] sm:$0xf]
        %v1068 = vld [vmem:[%s830 + $0x14] sm:$0xf]
        %v1069 = vld [vmem:[%s830 + $0x18] sm:$0xf]
        %v1070 = vld [vmem:[%s830 + $0x1c] sm:$0xf]
        %v1071 = vld [vmem:[%s830 + $0x20] sm:$0xf]
        %v1072 = vld [vmem:[%s830 + $0x24] sm:$0xf]
        %v1073 = vld [vmem:[%s830 + $0x28] sm:$0xf]
        %v1074 = vld [vmem:[%s830 + $0x2c] sm:$0xf]
        %v1075 = vld [vmem:[%s830 + $0x30] sm:$0xf]
        %v1076 = vld [vmem:[%s830 + $0x34] sm:$0xf]
        %v1077 = vld [vmem:[%s830 + $0x38] sm:$0xf]
        %v1078 = vld [vmem:[%s830 + $0x3c] sm:$0xf]
        %v1079 = vld [vmem:[%s830 + $0x40] sm:$0xf]
        %v1080 = vld [vmem:[%s830 + $0x44] sm:$0xf]
        %v1081 = vld [vmem:[%s830 + $0x48] sm:$0xf]
        %v1082 = vld [vmem:[%s830 + $0x4c] sm:$0xf]
        %v1083 = vld [vmem:[%s830 + $0x50] sm:$0xf]
        %v1084 = vld [vmem:[%s830 + $0x54] sm:$0xf]
        %v1085 = vld [vmem:[%s830 + $0x58] sm:$0xf]
        %v1086 = vld [vmem:[%s830 + $0x5c] sm:$0xf]
        %v1087 = vld [vmem:[%s830 + $0x60] sm:$0xf]
        %v1088 = vld [vmem:[%s830 + $0x64] sm:$0xf]
        %v1089 = vld [vmem:[%s830 + $0x68] sm:$0xf]
        %v1090 = vld [vmem:[%s830 + $0x6c] sm:$0xf]
        %v1091 = vld [vmem:[%s830 + $0x70] sm:$0xf]
        %v1092 = vld [vmem:[%s830 + $0x74] sm:$0xf]
        %v1093 = vld [vmem:[%s830 + $0x78] sm:$0xf]
        %v1094 = vld [vmem:[%s830 + $0x7c] sm:$0xf]
        %v1095 = vld [vmem:[%s830 + $0x80] sm:$0xf]
        %v1096 = vld [vmem:[%s830 + $0x84] sm:$0xf]
        %v1097 = vld [vmem:[%s830 + $0x88] sm:$0xf]
        %v1098 = vld [vmem:[%s830 + $0x8c] sm:$0xf]
        %v1099 = vld [vmem:[%s830 + $0x90] sm:$0xf]
        %v1100 = vld [vmem:[%s830 + $0x94] sm:$0xf]
        %v1101 = vld [vmem:[%s830 + $0x98] sm:$0xf]
        %v1102 = vld [vmem:[%s830 + $0x9c] sm:$0xf]
        %v1103 = vld [vmem:[%s830 + $0xa0] sm:$0xf]
        %v1104 = vld [vmem:[%s830 + $0xa4] sm:$0xf]
        %v1105 = vld [vmem:[%s830 + $0xa8] sm:$0xf]
        %v1106 = vld [vmem:[%s830 + $0xac] sm:$0xf]
        %v1107 = vld [vmem:[%s830 + $0xb0] sm:$0xf]
        %v1108 = vld [vmem:[%s830 + $0xb4] sm:$0xf]
        %v1109 = vld [vmem:[%s830 + $0xb8] sm:$0xf]
        %v1110 = vld [vmem:[%s830 + $0xbc] sm:$0xf]
        %v1111 = vld [vmem:[%s830 + $0xc0] sm:$0xf]
        %v1112 = vld [vmem:[%s830 + $0xc4] sm:$0xf]
        %v1113 = vld [vmem:[%s830 + $0xc8] sm:$0xf]
        %v1114 = vld [vmem:[%s830 + $0xcc] sm:$0xf]
        %v1115 = vld [vmem:[%s830 + $0xd0] sm:$0xf]
        %v1116 = vld [vmem:[%s830 + $0xd4] sm:$0xf]
        %v1117 = vld [vmem:[%s830 + $0xd8] sm:$0xf]
        %v1118 = vld [vmem:[%s830 + $0xdc] sm:$0xf]
        %v1119 = vld [vmem:[%s830 + $0xe0] sm:$0xf]
        %v1120 = vld [vmem:[%s830 + $0xe4] sm:$0xf]
        %v1121 = vld [vmem:[%s830 + $0xe8] sm:$0xf]
        %v1122 = vld [vmem:[%s830 + $0xec] sm:$0xf]
        %v1123 = vld [vmem:[%s830 + $0xf0] sm:$0xf]
        %v1124 = vld [vmem:[%s830 + $0xf4] sm:$0xf]
        %v1125 = vld [vmem:[%s830 + $0xf8] sm:$0xf]
        %v1126 = vld [vmem:[%s830 + $0xfc] sm:$0xf]
        %v1143 = vunpack.c.l.b16 %v1063
        %v1144 = vunpack.c.l.b16 %v1064
        %v1145 = vunpack.c.l.b16 %v1065
        %v1146 = vunpack.c.l.b16 %v1066
        %v1147 = vunpack.c.l.b16 %v1067
        %v1148 = vunpack.c.l.b16 %v1068
        %v1149 = vunpack.c.l.b16 %v1069
        %v1150 = vunpack.c.l.b16 %v1070
        %v1151 = vunpack.c.l.b16 %v1071
        %v1152 = vunpack.c.l.b16 %v1072
        %v1153 = vunpack.c.l.b16 %v1073
        %v1154 = vunpack.c.l.b16 %v1074
        %v1155 = vunpack.c.l.b16 %v1075
        %v1156 = vunpack.c.l.b16 %v1076
        %v1157 = vunpack.c.l.b16 %v1077
        %v1158 = vunpack.c.l.b16 %v1078
        %v1159 = vpack.c.b16 %v1144, %v1143
        %v1160 = vpack.c.b16 %v1146, %v1145
        %v1161 = vpack.c.b16 %v1148, %v1147
        %v1162 = vpack.c.b16 %v1150, %v1149
        %v1163 = vpack.c.b16 %v1152, %v1151
        %v1164 = vpack.c.b16 %v1154, %v1153
        %v1165 = vpack.c.b16 %v1156, %v1155
        %v1166 = vpack.c.b16 %v1158, %v1157
        %1175 = vmatpush.bf16.msra.mxu0 %v1166
        %1176 = vmatpush.bf16.msra.mxu0 %v1165
        %1177 = vmatpush.bf16.msra.mxu0 %v1164
        %1178 = vmatpush.bf16.msra.mxu0 %v1163
        %1179 = vmatpush.bf16.msra.mxu0 %v1162
        %1180 = vmatpush.bf16.msra.mxu0 %v1161
        %1181 = vmatpush.bf16.msra.mxu0 %v1160
        %1182 = vmatpush.bf16.msra.mxu0 %v1159
        %1183 = vmatmul.bf16.gmra.mxu0 %v1062
        %v1184 = vpop.f32.mrf.mxu0
        %v1185 = vadd.f32 0.0, %v1184
        %v1186 = vpop.f32.mrf.mxu0
        %1187 = vdwg.mxu0
        %v1204 = vunpack.c.l.b16 %v1079
        %v1205 = vunpack.c.l.b16 %v1080
        %v1206 = vunpack.c.l.b16 %v1081
        %v1207 = vunpack.c.l.b16 %v1082
        %v1208 = vunpack.c.l.b16 %v1083
        %v1209 = vunpack.c.l.b16 %v1084
        %v1210 = vunpack.c.l.b16 %v1085
        %v1211 = vunpack.c.l.b16 %v1086
        %v1212 = vunpack.c.l.b16 %v1087
        %v1213 = vunpack.c.l.b16 %v1088
        %v1214 = vunpack.c.l.b16 %v1089
        %v1215 = vunpack.c.l.b16 %v1090
        %v1216 = vunpack.c.l.b16 %v1091
        %v1217 = vunpack.c.l.b16 %v1092
        %v1218 = vunpack.c.l.b16 %v1093
        %v1219 = vunpack.c.l.b16 %v1094
        %v1220 = vpack.c.b16 %v1205, %v1204
        %v1221 = vpack.c.b16 %v1207, %v1206
        %v1222 = vpack.c.b16 %v1209, %v1208
        %v1223 = vpack.c.b16 %v1211, %v1210
        %v1224 = vpack.c.b16 %v1213, %v1212
        %v1225 = vpack.c.b16 %v1215, %v1214
        %v1226 = vpack.c.b16 %v1217, %v1216
        %v1227 = vpack.c.b16 %v1219, %v1218
        %1236 = vmatpush.bf16.msra.mxu0 %v1227
        %1237 = vmatpush.bf16.msra.mxu0 %v1226
        %1238 = vmatpush.bf16.msra.mxu0 %v1225
        %1239 = vmatpush.bf16.msra.mxu0 %v1224
        %1240 = vmatpush.bf16.msra.mxu0 %v1223
        %1241 = vmatpush.bf16.msra.mxu0 %v1222
        %1242 = vmatpush.bf16.msra.mxu0 %v1221
        %1243 = vmatpush.bf16.msra.mxu0 %v1220
        %1244 = vmatmul.bf16.gmra.mxu0 %v1062
        %v1245 = vpop.f32.mrf.mxu0
        %v1246 = vadd.f32 0.0, %v1245
        %v1247 = vpop.f32.mrf.mxu0
        %1248 = vdwg.mxu0
        %v1265 = vunpack.c.l.b16 %v1095
        %v1266 = vunpack.c.l.b16 %v1096
        %v1267 = vunpack.c.l.b16 %v1097
        %v1268 = vunpack.c.l.b16 %v1098
        %v1269 = vunpack.c.l.b16 %v1099
        %v1270 = vunpack.c.l.b16 %v1100
        %v1271 = vunpack.c.l.b16 %v1101
        %v1272 = vunpack.c.l.b16 %v1102
        %v1273 = vunpack.c.l.b16 %v1103
        %v1274 = vunpack.c.l.b16 %v1104
        %v1275 = vunpack.c.l.b16 %v1105
        %v1276 = vunpack.c.l.b16 %v1106
        %v1277 = vunpack.c.l.b16 %v1107
        %v1278 = vunpack.c.l.b16 %v1108
        %v1279 = vunpack.c.l.b16 %v1109
        %v1280 = vunpack.c.l.b16 %v1110
        %v1281 = vpack.c.b16 %v1266, %v1265
        %v1282 = vpack.c.b16 %v1268, %v1267
        %v1283 = vpack.c.b16 %v1270, %v1269
        %v1284 = vpack.c.b16 %v1272, %v1271
        %v1285 = vpack.c.b16 %v1274, %v1273
        %v1286 = vpack.c.b16 %v1276, %v1275
        %v1287 = vpack.c.b16 %v1278, %v1277
        %v1288 = vpack.c.b16 %v1280, %v1279
        %1297 = vmatpush.bf16.msra.mxu0 %v1288
        %1298 = vmatpush.bf16.msra.mxu0 %v1287
        %1299 = vmatpush.bf16.msra.mxu0 %v1286
        %1300 = vmatpush.bf16.msra.mxu0 %v1285
        %1301 = vmatpush.bf16.msra.mxu0 %v1284
        %1302 = vmatpush.bf16.msra.mxu0 %v1283
        %1303 = vmatpush.bf16.msra.mxu0 %v1282
        %1304 = vmatpush.bf16.msra.mxu0 %v1281
        %1305 = vmatmul.bf16.gmra.mxu0 %v1062
        %v1306 = vpop.f32.mrf.mxu0
        %v1307 = vadd.f32 0.0, %v1306
        %v1308 = vpop.f32.mrf.mxu0
        %1309 = vdwg.mxu0
        %v1326 = vunpack.c.l.b16 %v1111
        %v1327 = vunpack.c.l.b16 %v1112
        %v1328 = vunpack.c.l.b16 %v1113
        %v1329 = vunpack.c.l.b16 %v1114
        %v1330 = vunpack.c.l.b16 %v1115
        %v1331 = vunpack.c.l.b16 %v1116
        %v1332 = vunpack.c.l.b16 %v1117
        %v1333 = vunpack.c.l.b16 %v1118
        %v1334 = vunpack.c.l.b16 %v1119
        %v1335 = vunpack.c.l.b16 %v1120
        %v1336 = vunpack.c.l.b16 %v1121
        %v1337 = vunpack.c.l.b16 %v1122
        %v1338 = vunpack.c.l.b16 %v1123
        %v1339 = vunpack.c.l.b16 %v1124
        %v1340 = vunpack.c.l.b16 %v1125
        %v1341 = vunpack.c.l.b16 %v1126
        %v1342 = vpack.c.b16 %v1327, %v1326
        %v1343 = vpack.c.b16 %v1329, %v1328
        %v1344 = vpack.c.b16 %v1331, %v1330
        %v1345 = vpack.c.b16 %v1333, %v1332
        %v1346 = vpack.c.b16 %v1335, %v1334
        %v1347 = vpack.c.b16 %v1337, %v1336
        %v1348 = vpack.c.b16 %v1339, %v1338
        %v1349 = vpack.c.b16 %v1341, %v1340
        %1358 = vmatpush.bf16.msra.mxu0 %v1349
        %1359 = vmatpush.bf16.msra.mxu0 %v1348
        %1360 = vmatpush.bf16.msra.mxu0 %v1347
        %1361 = vmatpush.bf16.msra.mxu0 %v1346
        %1362 = vmatpush.bf16.msra.mxu0 %v1345
        %1363 = vmatpush.bf16.msra.mxu0 %v1344
        %1364 = vmatpush.bf16.msra.mxu0 %v1343
        %1365 = vmatpush.bf16.msra.mxu0 %v1342
        %1366 = vmatmul.bf16.gmra.mxu0 %v1062
        %v1367 = vpop.f32.mrf.mxu0
        %v1368 = vadd.f32 0.0, %v1367
        %v1369 = vpop.f32.mrf.mxu0
        %1370 = vdwg.mxu0
        %v1371 = vld [vmem:[%s835] sm:$0xf]
        %v1372 = vld [vmem:[%s835 + $0x4] sm:$0xf]
        %v1373 = vld [vmem:[%s835 + $0x8] sm:$0xf]
        %v1374 = vld [vmem:[%s835 + $0xc] sm:$0xf]
        %v1375 = vld [vmem:[%s835 + $0x10] sm:$0xf]
        %v1376 = vld [vmem:[%s835 + $0x14] sm:$0xf]
        %v1377 = vld [vmem:[%s835 + $0x18] sm:$0xf]
        %v1378 = vld [vmem:[%s835 + $0x1c] sm:$0xf]
        %v1379 = vld [vmem:[%s835 + $0x20] sm:$0xf]
        %v1380 = vld [vmem:[%s835 + $0x24] sm:$0xf]
        %v1381 = vld [vmem:[%s835 + $0x28] sm:$0xf]
        %v1382 = vld [vmem:[%s835 + $0x2c] sm:$0xf]
        %v1383 = vld [vmem:[%s835 + $0x30] sm:$0xf]
        %v1384 = vld [vmem:[%s835 + $0x34] sm:$0xf]
        %v1385 = vld [vmem:[%s835 + $0x38] sm:$0xf]
        %v1386 = vld [vmem:[%s835 + $0x3c] sm:$0xf]
        %v1387 = vld [vmem:[%s835 + $0x40] sm:$0xf]
        %v1388 = vld [vmem:[%s835 + $0x44] sm:$0xf]
        %v1389 = vld [vmem:[%s835 + $0x48] sm:$0xf]
        %v1390 = vld [vmem:[%s835 + $0x4c] sm:$0xf]
        %v1391 = vld [vmem:[%s835 + $0x50] sm:$0xf]
        %v1392 = vld [vmem:[%s835 + $0x54] sm:$0xf]
        %v1393 = vld [vmem:[%s835 + $0x58] sm:$0xf]
        %v1394 = vld [vmem:[%s835 + $0x5c] sm:$0xf]
        %v1395 = vld [vmem:[%s835 + $0x60] sm:$0xf]
        %v1396 = vld [vmem:[%s835 + $0x64] sm:$0xf]
        %v1397 = vld [vmem:[%s835 + $0x68] sm:$0xf]
        %v1398 = vld [vmem:[%s835 + $0x6c] sm:$0xf]
        %v1399 = vld [vmem:[%s835 + $0x70] sm:$0xf]
        %v1400 = vld [vmem:[%s835 + $0x74] sm:$0xf]
        %v1401 = vld [vmem:[%s835 + $0x78] sm:$0xf]
        %v1402 = vld [vmem:[%s835 + $0x7c] sm:$0xf]
        %v1403 = vld [vmem:[%s835 + $0x80] sm:$0xf]
        %v1404 = vld [vmem:[%s835 + $0x84] sm:$0xf]
        %v1405 = vld [vmem:[%s835 + $0x88] sm:$0xf]
        %v1406 = vld [vmem:[%s835 + $0x8c] sm:$0xf]
        %v1407 = vld [vmem:[%s835 + $0x90] sm:$0xf]
        %v1408 = vld [vmem:[%s835 + $0x94] sm:$0xf]
        %v1409 = vld [vmem:[%s835 + $0x98] sm:$0xf]
        %v1410 = vld [vmem:[%s835 + $0x9c] sm:$0xf]
        %v1411 = vld [vmem:[%s835 + $0xa0] sm:$0xf]
        %v1412 = vld [vmem:[%s835 + $0xa4] sm:$0xf]
        %v1413 = vld [vmem:[%s835 + $0xa8] sm:$0xf]
        %v1414 = vld [vmem:[%s835 + $0xac] sm:$0xf]
        %v1415 = vld [vmem:[%s835 + $0xb0] sm:$0xf]
        %v1416 = vld [vmem:[%s835 + $0xb4] sm:$0xf]
        %v1417 = vld [vmem:[%s835 + $0xb8] sm:$0xf]
        %v1418 = vld [vmem:[%s835 + $0xbc] sm:$0xf]
        %v1419 = vld [vmem:[%s835 + $0xc0] sm:$0xf]
        %v1420 = vld [vmem:[%s835 + $0xc4] sm:$0xf]
        %v1421 = vld [vmem:[%s835 + $0xc8] sm:$0xf]
        %v1422 = vld [vmem:[%s835 + $0xcc] sm:$0xf]
        %v1423 = vld [vmem:[%s835 + $0xd0] sm:$0xf]
        %v1424 = vld [vmem:[%s835 + $0xd4] sm:$0xf]
        %v1425 = vld [vmem:[%s835 + $0xd8] sm:$0xf]
        %v1426 = vld [vmem:[%s835 + $0xdc] sm:$0xf]
        %v1427 = vld [vmem:[%s835 + $0xe0] sm:$0xf]
        %v1428 = vld [vmem:[%s835 + $0xe4] sm:$0xf]
        %v1429 = vld [vmem:[%s835 + $0xe8] sm:$0xf]
        %v1430 = vld [vmem:[%s835 + $0xec] sm:$0xf]
        %v1431 = vld [vmem:[%s835 + $0xf0] sm:$0xf]
        %v1432 = vld [vmem:[%s835 + $0xf4] sm:$0xf]
        %v1433 = vld [vmem:[%s835 + $0xf8] sm:$0xf]
        %v1434 = vld [vmem:[%s835 + $0xfc] sm:$0xf]
        %v1451 = vunpack.c.l.b16 %v1371
        %v1452 = vunpack.c.l.b16 %v1372
        %v1453 = vunpack.c.l.b16 %v1373
        %v1454 = vunpack.c.l.b16 %v1374
        %v1455 = vunpack.c.l.b16 %v1375
        %v1456 = vunpack.c.l.b16 %v1376
        %v1457 = vunpack.c.l.b16 %v1377
        %v1458 = vunpack.c.l.b16 %v1378
        %v1459 = vunpack.c.l.b16 %v1379
        %v1460 = vunpack.c.l.b16 %v1380
        %v1461 = vunpack.c.l.b16 %v1381
        %v1462 = vunpack.c.l.b16 %v1382
        %v1463 = vunpack.c.l.b16 %v1383
        %v1464 = vunpack.c.l.b16 %v1384
        %v1465 = vunpack.c.l.b16 %v1385
        %v1466 = vunpack.c.l.b16 %v1386
        %v1467 = vpack.c.b16 %v1452, %v1451
        %v1468 = vpack.c.b16 %v1454, %v1453
        %v1469 = vpack.c.b16 %v1456, %v1455
        %v1470 = vpack.c.b16 %v1458, %v1457
        %v1471 = vpack.c.b16 %v1460, %v1459
        %v1472 = vpack.c.b16 %v1462, %v1461
        %v1473 = vpack.c.b16 %v1464, %v1463
        %v1474 = vpack.c.b16 %v1466, %v1465
        %1483 = vmatpush.bf16.msra.mxu0 %v1474
        %1484 = vmatpush.bf16.msra.mxu0 %v1473
        %1485 = vmatpush.bf16.msra.mxu0 %v1472
        %1486 = vmatpush.bf16.msra.mxu0 %v1471
        %1487 = vmatpush.bf16.msra.mxu0 %v1470
        %1488 = vmatpush.bf16.msra.mxu0 %v1469
        %1489 = vmatpush.bf16.msra.mxu0 %v1468
        %1490 = vmatpush.bf16.msra.mxu0 %v1467
        %1491 = vmatmul.bf16.gmra.mxu0 %v1062
        %v1492 = vpop.f32.mrf.mxu0
        %v1493 = vadd.f32 0.0, %v1492
        %v1494 = vpop.f32.mrf.mxu0
        %1495 = vdwg.mxu0
        %v1512 = vunpack.c.l.b16 %v1387
        %v1513 = vunpack.c.l.b16 %v1388
        %v1514 = vunpack.c.l.b16 %v1389
        %v1515 = vunpack.c.l.b16 %v1390
        %v1516 = vunpack.c.l.b16 %v1391
        %v1517 = vunpack.c.l.b16 %v1392
        %v1518 = vunpack.c.l.b16 %v1393
        %v1519 = vunpack.c.l.b16 %v1394
        %v1520 = vunpack.c.l.b16 %v1395
        %v1521 = vunpack.c.l.b16 %v1396
        %v1522 = vunpack.c.l.b16 %v1397
        %v1523 = vunpack.c.l.b16 %v1398
        %v1524 = vunpack.c.l.b16 %v1399
        %v1525 = vunpack.c.l.b16 %v1400
        %v1526 = vunpack.c.l.b16 %v1401
        %v1527 = vunpack.c.l.b16 %v1402
        %v1528 = vpack.c.b16 %v1513, %v1512
        %v1529 = vpack.c.b16 %v1515, %v1514
        %v1530 = vpack.c.b16 %v1517, %v1516
        %v1531 = vpack.c.b16 %v1519, %v1518
        %v1532 = vpack.c.b16 %v1521, %v1520
        %v1533 = vpack.c.b16 %v1523, %v1522
        %v1534 = vpack.c.b16 %v1525, %v1524
        %v1535 = vpack.c.b16 %v1527, %v1526
        %1544 = vmatpush.bf16.msra.mxu0 %v1535
        %1545 = vmatpush.bf16.msra.mxu0 %v1534
        %1546 = vmatpush.bf16.msra.mxu0 %v1533
        %1547 = vmatpush.bf16.msra.mxu0 %v1532
        %1548 = vmatpush.bf16.msra.mxu0 %v1531
        %1549 = vmatpush.bf16.msra.mxu0 %v1530
        %1550 = vmatpush.bf16.msra.mxu0 %v1529
        %1551 = vmatpush.bf16.msra.mxu0 %v1528
        %1552 = vmatmul.bf16.gmra.mxu0 %v1062
        %v1553 = vpop.f32.mrf.mxu0
        %v1554 = vadd.f32 0.0, %v1553
        %v1555 = vpop.f32.mrf.mxu0
        %1556 = vdwg.mxu0
        %v1573 = vunpack.c.l.b16 %v1403
        %v1574 = vunpack.c.l.b16 %v1404
        %v1575 = vunpack.c.l.b16 %v1405
        %v1576 = vunpack.c.l.b16 %v1406
        %v1577 = vunpack.c.l.b16 %v1407
        %v1578 = vunpack.c.l.b16 %v1408
        %v1579 = vunpack.c.l.b16 %v1409
        %v1580 = vunpack.c.l.b16 %v1410
        %v1581 = vunpack.c.l.b16 %v1411
        %v1582 = vunpack.c.l.b16 %v1412
        %v1583 = vunpack.c.l.b16 %v1413
        %v1584 = vunpack.c.l.b16 %v1414
        %v1585 = vunpack.c.l.b16 %v1415
        %v1586 = vunpack.c.l.b16 %v1416
        %v1587 = vunpack.c.l.b16 %v1417
        %v1588 = vunpack.c.l.b16 %v1418
        %v1589 = vpack.c.b16 %v1574, %v1573
        %v1590 = vpack.c.b16 %v1576, %v1575
        %v1591 = vpack.c.b16 %v1578, %v1577
        %v1592 = vpack.c.b16 %v1580, %v1579
        %v1593 = vpack.c.b16 %v1582, %v1581
        %v1594 = vpack.c.b16 %v1584, %v1583
        %v1595 = vpack.c.b16 %v1586, %v1585
        %v1596 = vpack.c.b16 %v1588, %v1587
        %1605 = vmatpush.bf16.msra.mxu0 %v1596
        %1606 = vmatpush.bf16.msra.mxu0 %v1595
        %1607 = vmatpush.bf16.msra.mxu0 %v1594
        %1608 = vmatpush.bf16.msra.mxu0 %v1593
        %1609 = vmatpush.bf16.msra.mxu0 %v1592
        %1610 = vmatpush.bf16.msra.mxu0 %v1591
        %1611 = vmatpush.bf16.msra.mxu0 %v1590
        %1612 = vmatpush.bf16.msra.mxu0 %v1589
        %1613 = vmatmul.bf16.gmra.mxu0 %v1062
        %v1614 = vpop.f32.mrf.mxu0
        %v1615 = vadd.f32 0.0, %v1614
        %v1616 = vpop.f32.mrf.mxu0
        %1617 = vdwg.mxu0
        %v1634 = vunpack.c.l.b16 %v1419
        %v1635 = vunpack.c.l.b16 %v1420
        %v1636 = vunpack.c.l.b16 %v1421
        %v1637 = vunpack.c.l.b16 %v1422
        %v1638 = vunpack.c.l.b16 %v1423
        %v1639 = vunpack.c.l.b16 %v1424
        %v1640 = vunpack.c.l.b16 %v1425
        %v1641 = vunpack.c.l.b16 %v1426
        %v1642 = vunpack.c.l.b16 %v1427
        %v1643 = vunpack.c.l.b16 %v1428
        %v1644 = vunpack.c.l.b16 %v1429
        %v1645 = vunpack.c.l.b16 %v1430
        %v1646 = vunpack.c.l.b16 %v1431
        %v1647 = vunpack.c.l.b16 %v1432
        %v1648 = vunpack.c.l.b16 %v1433
        %v1649 = vunpack.c.l.b16 %v1434
        %v1650 = vpack.c.b16 %v1635, %v1634
        %v1651 = vpack.c.b16 %v1637, %v1636
        %v1652 = vpack.c.b16 %v1639, %v1638
        %v1653 = vpack.c.b16 %v1641, %v1640
        %v1654 = vpack.c.b16 %v1643, %v1642
        %v1655 = vpack.c.b16 %v1645, %v1644
        %v1656 = vpack.c.b16 %v1647, %v1646
        %v1657 = vpack.c.b16 %v1649, %v1648
        %1666 = vmatpush.bf16.msra.mxu0 %v1657
        %1667 = vmatpush.bf16.msra.mxu0 %v1656
        %1668 = vmatpush.bf16.msra.mxu0 %v1655
        %1669 = vmatpush.bf16.msra.mxu0 %v1654
        %1670 = vmatpush.bf16.msra.mxu0 %v1653
        %1671 = vmatpush.bf16.msra.mxu0 %v1652
        %1672 = vmatpush.bf16.msra.mxu0 %v1651
        %1673 = vmatpush.bf16.msra.mxu0 %v1650
        %1674 = vmatmul.bf16.gmra.mxu0 %v1062
        %v1675 = vpop.f32.mrf.mxu0
        %v1676 = vadd.f32 0.0, %v1675
        %v1677 = vpop.f32.mrf.mxu0
        %1678 = vdwg.mxu0
        %v1679 = vld [vmem:[%s840] sm:$0xf]
        %v1680 = vld [vmem:[%s840 + $0x4] sm:$0xf]
        %v1681 = vld [vmem:[%s840 + $0x8] sm:$0xf]
        %v1682 = vld [vmem:[%s840 + $0xc] sm:$0xf]
        %v1683 = vld [vmem:[%s840 + $0x10] sm:$0xf]
        %v1684 = vld [vmem:[%s840 + $0x14] sm:$0xf]
        %v1685 = vld [vmem:[%s840 + $0x18] sm:$0xf]
        %v1686 = vld [vmem:[%s840 + $0x1c] sm:$0xf]
        %v1687 = vld [vmem:[%s840 + $0x20] sm:$0xf]
        %v1688 = vld [vmem:[%s840 + $0x24] sm:$0xf]
        %v1689 = vld [vmem:[%s840 + $0x28] sm:$0xf]
        %v1690 = vld [vmem:[%s840 + $0x2c] sm:$0xf]
        %v1691 = vld [vmem:[%s840 + $0x30] sm:$0xf]
        %v1692 = vld [vmem:[%s840 + $0x34] sm:$0xf]
        %v1693 = vld [vmem:[%s840 + $0x38] sm:$0xf]
        %v1694 = vld [vmem:[%s840 + $0x3c] sm:$0xf]
        %v1695 = vld [vmem:[%s840 + $0x40] sm:$0xf]
        %v1696 = vld [vmem:[%s840 + $0x44] sm:$0xf]
        %v1697 = vld [vmem:[%s840 + $0x48] sm:$0xf]
        %v1698 = vld [vmem:[%s840 + $0x4c] sm:$0xf]
        %v1699 = vld [vmem:[%s840 + $0x50] sm:$0xf]
        %v1700 = vld [vmem:[%s840 + $0x54] sm:$0xf]
        %v1701 = vld [vmem:[%s840 + $0x58] sm:$0xf]
        %v1702 = vld [vmem:[%s840 + $0x5c] sm:$0xf]
        %v1703 = vld [vmem:[%s840 + $0x60] sm:$0xf]
        %v1704 = vld [vmem:[%s840 + $0x64] sm:$0xf]
        %v1705 = vld [vmem:[%s840 + $0x68] sm:$0xf]
        %v1706 = vld [vmem:[%s840 + $0x6c] sm:$0xf]
        %v1707 = vld [vmem:[%s840 + $0x70] sm:$0xf]
        %v1708 = vld [vmem:[%s840 + $0x74] sm:$0xf]
        %v1709 = vld [vmem:[%s840 + $0x78] sm:$0xf]
        %v1710 = vld [vmem:[%s840 + $0x7c] sm:$0xf]
        %v1711 = vld [vmem:[%s840 + $0x80] sm:$0xf]
        %v1712 = vld [vmem:[%s840 + $0x84] sm:$0xf]
        %v1713 = vld [vmem:[%s840 + $0x88] sm:$0xf]
        %v1714 = vld [vmem:[%s840 + $0x8c] sm:$0xf]
        %v1715 = vld [vmem:[%s840 + $0x90] sm:$0xf]
        %v1716 = vld [vmem:[%s840 + $0x94] sm:$0xf]
        %v1717 = vld [vmem:[%s840 + $0x98] sm:$0xf]
        %v1718 = vld [vmem:[%s840 + $0x9c] sm:$0xf]
        %v1719 = vld [vmem:[%s840 + $0xa0] sm:$0xf]
        %v1720 = vld [vmem:[%s840 + $0xa4] sm:$0xf]
        %v1721 = vld [vmem:[%s840 + $0xa8] sm:$0xf]
        %v1722 = vld [vmem:[%s840 + $0xac] sm:$0xf]
        %v1723 = vld [vmem:[%s840 + $0xb0] sm:$0xf]
        %v1724 = vld [vmem:[%s840 + $0xb4] sm:$0xf]
        %v1725 = vld [vmem:[%s840 + $0xb8] sm:$0xf]
        %v1726 = vld [vmem:[%s840 + $0xbc] sm:$0xf]
        %v1727 = vld [vmem:[%s840 + $0xc0] sm:$0xf]
        %v1728 = vld [vmem:[%s840 + $0xc4] sm:$0xf]
        %v1729 = vld [vmem:[%s840 + $0xc8] sm:$0xf]
        %v1730 = vld [vmem:[%s840 + $0xcc] sm:$0xf]
        %v1731 = vld [vmem:[%s840 + $0xd0] sm:$0xf]
        %v1732 = vld [vmem:[%s840 + $0xd4] sm:$0xf]
        %v1733 = vld [vmem:[%s840 + $0xd8] sm:$0xf]
        %v1734 = vld [vmem:[%s840 + $0xdc] sm:$0xf]
        %v1735 = vld [vmem:[%s840 + $0xe0] sm:$0xf]
        %v1736 = vld [vmem:[%s840 + $0xe4] sm:$0xf]
        %v1737 = vld [vmem:[%s840 + $0xe8] sm:$0xf]
        %v1738 = vld [vmem:[%s840 + $0xec] sm:$0xf]
        %v1739 = vld [vmem:[%s840 + $0xf0] sm:$0xf]
        %v1740 = vld [vmem:[%s840 + $0xf4] sm:$0xf]
        %v1741 = vld [vmem:[%s840 + $0xf8] sm:$0xf]
        %v1742 = vld [vmem:[%s840 + $0xfc] sm:$0xf]
        %v1759 = vunpack.c.l.b16 %v1679
        %v1760 = vunpack.c.l.b16 %v1680
        %v1761 = vunpack.c.l.b16 %v1681
        %v1762 = vunpack.c.l.b16 %v1682
        %v1763 = vunpack.c.l.b16 %v1683
        %v1764 = vunpack.c.l.b16 %v1684
        %v1765 = vunpack.c.l.b16 %v1685
        %v1766 = vunpack.c.l.b16 %v1686
        %v1767 = vunpack.c.l.b16 %v1687
        %v1768 = vunpack.c.l.b16 %v1688
        %v1769 = vunpack.c.l.b16 %v1689
        %v1770 = vunpack.c.l.b16 %v1690
        %v1771 = vunpack.c.l.b16 %v1691
        %v1772 = vunpack.c.l.b16 %v1692
        %v1773 = vunpack.c.l.b16 %v1693
        %v1774 = vunpack.c.l.b16 %v1694
        %v1775 = vpack.c.b16 %v1760, %v1759
        %v1776 = vpack.c.b16 %v1762, %v1761
        %v1777 = vpack.c.b16 %v1764, %v1763
        %v1778 = vpack.c.b16 %v1766, %v1765
        %v1779 = vpack.c.b16 %v1768, %v1767
        %v1780 = vpack.c.b16 %v1770, %v1769
        %v1781 = vpack.c.b16 %v1772, %v1771
        %v1782 = vpack.c.b16 %v1774, %v1773
        %1791 = vmatpush.bf16.msra.mxu0 %v1782
        %1792 = vmatpush.bf16.msra.mxu0 %v1781
        %1793 = vmatpush.bf16.msra.mxu0 %v1780
        %1794 = vmatpush.bf16.msra.mxu0 %v1779
        %1795 = vmatpush.bf16.msra.mxu0 %v1778
        %1796 = vmatpush.bf16.msra.mxu0 %v1777
        %1797 = vmatpush.bf16.msra.mxu0 %v1776
        %1798 = vmatpush.bf16.msra.mxu0 %v1775
        %1799 = vmatmul.bf16.gmra.mxu0 %v1062
        %v1800 = vpop.f32.mrf.mxu0
        %v1801 = vadd.f32 0.0, %v1800
        %v1802 = vpop.f32.mrf.mxu0
        %1803 = vdwg.mxu0
        %v1820 = vunpack.c.l.b16 %v1695
        %v1821 = vunpack.c.l.b16 %v1696
        %v1822 = vunpack.c.l.b16 %v1697
        %v1823 = vunpack.c.l.b16 %v1698
        %v1824 = vunpack.c.l.b16 %v1699
        %v1825 = vunpack.c.l.b16 %v1700
        %v1826 = vunpack.c.l.b16 %v1701
        %v1827 = vunpack.c.l.b16 %v1702
        %v1828 = vunpack.c.l.b16 %v1703
        %v1829 = vunpack.c.l.b16 %v1704
        %v1830 = vunpack.c.l.b16 %v1705
        %v1831 = vunpack.c.l.b16 %v1706
        %v1832 = vunpack.c.l.b16 %v1707
        %v1833 = vunpack.c.l.b16 %v1708
        %v1834 = vunpack.c.l.b16 %v1709
        %v1835 = vunpack.c.l.b16 %v1710
        %v1836 = vpack.c.b16 %v1821, %v1820
        %v1837 = vpack.c.b16 %v1823, %v1822
        %v1838 = vpack.c.b16 %v1825, %v1824
        %v1839 = vpack.c.b16 %v1827, %v1826
        %v1840 = vpack.c.b16 %v1829, %v1828
        %v1841 = vpack.c.b16 %v1831, %v1830
        %v1842 = vpack.c.b16 %v1833, %v1832
        %v1843 = vpack.c.b16 %v1835, %v1834
        %1852 = vmatpush.bf16.msra.mxu0 %v1843
        %1853 = vmatpush.bf16.msra.mxu0 %v1842
        %1854 = vmatpush.bf16.msra.mxu0 %v1841
        %1855 = vmatpush.bf16.msra.mxu0 %v1840
        %1856 = vmatpush.bf16.msra.mxu0 %v1839
        %1857 = vmatpush.bf16.msra.mxu0 %v1838
        %1858 = vmatpush.bf16.msra.mxu0 %v1837
        %1859 = vmatpush.bf16.msra.mxu0 %v1836
        %1860 = vmatmul.bf16.gmra.mxu0 %v1062
        %v1861 = vpop.f32.mrf.mxu0
        %v1862 = vadd.f32 0.0, %v1861
        %v1863 = vpop.f32.mrf.mxu0
        %1864 = vdwg.mxu0
        %v1881 = vunpack.c.l.b16 %v1711
        %v1882 = vunpack.c.l.b16 %v1712
        %v1883 = vunpack.c.l.b16 %v1713
        %v1884 = vunpack.c.l.b16 %v1714
        %v1885 = vunpack.c.l.b16 %v1715
        %v1886 = vunpack.c.l.b16 %v1716
        %v1887 = vunpack.c.l.b16 %v1717
        %v1888 = vunpack.c.l.b16 %v1718
        %v1889 = vunpack.c.l.b16 %v1719
        %v1890 = vunpack.c.l.b16 %v1720
        %v1891 = vunpack.c.l.b16 %v1721
        %v1892 = vunpack.c.l.b16 %v1722
        %v1893 = vunpack.c.l.b16 %v1723
        %v1894 = vunpack.c.l.b16 %v1724
        %v1895 = vunpack.c.l.b16 %v1725
        %v1896 = vunpack.c.l.b16 %v1726
        %v1897 = vpack.c.b16 %v1882, %v1881
        %v1898 = vpack.c.b16 %v1884, %v1883
        %v1899 = vpack.c.b16 %v1886, %v1885
        %v1900 = vpack.c.b16 %v1888, %v1887
        %v1901 = vpack.c.b16 %v1890, %v1889
        %v1902 = vpack.c.b16 %v1892, %v1891
        %v1903 = vpack.c.b16 %v1894, %v1893
        %v1904 = vpack.c.b16 %v1896, %v1895
        %1913 = vmatpush.bf16.msra.mxu0 %v1904
        %1914 = vmatpush.bf16.msra.mxu0 %v1903
        %1915 = vmatpush.bf16.msra.mxu0 %v1902
        %1916 = vmatpush.bf16.msra.mxu0 %v1901
        %1917 = vmatpush.bf16.msra.mxu0 %v1900
        %1918 = vmatpush.bf16.msra.mxu0 %v1899
        %1919 = vmatpush.bf16.msra.mxu0 %v1898
        %1920 = vmatpush.bf16.msra.mxu0 %v1897
        %1921 = vmatmul.bf16.gmra.mxu0 %v1062
        %v1922 = vpop.f32.mrf.mxu0
        %v1923 = vadd.f32 0.0, %v1922
        %v1924 = vpop.f32.mrf.mxu0
        %1925 = vdwg.mxu0
        %v1942 = vunpack.c.l.b16 %v1727
        %v1943 = vunpack.c.l.b16 %v1728
        %v1944 = vunpack.c.l.b16 %v1729
        %v1945 = vunpack.c.l.b16 %v1730
        %v1946 = vunpack.c.l.b16 %v1731
        %v1947 = vunpack.c.l.b16 %v1732
        %v1948 = vunpack.c.l.b16 %v1733
        %v1949 = vunpack.c.l.b16 %v1734
        %v1950 = vunpack.c.l.b16 %v1735
        %v1951 = vunpack.c.l.b16 %v1736
        %v1952 = vunpack.c.l.b16 %v1737
        %v1953 = vunpack.c.l.b16 %v1738
        %v1954 = vunpack.c.l.b16 %v1739
        %v1955 = vunpack.c.l.b16 %v1740
        %v1956 = vunpack.c.l.b16 %v1741
        %v1957 = vunpack.c.l.b16 %v1742
        %v1958 = vpack.c.b16 %v1943, %v1942
        %v1959 = vpack.c.b16 %v1945, %v1944
        %v1960 = vpack.c.b16 %v1947, %v1946
        %v1961 = vpack.c.b16 %v1949, %v1948
        %v1962 = vpack.c.b16 %v1951, %v1950
        %v1963 = vpack.c.b16 %v1953, %v1952
        %v1964 = vpack.c.b16 %v1955, %v1954
        %v1965 = vpack.c.b16 %v1957, %v1956
        %1974 = vmatpush.bf16.msra.mxu0 %v1965
        %1975 = vmatpush.bf16.msra.mxu0 %v1964
        %1976 = vmatpush.bf16.msra.mxu0 %v1963
        %1977 = vmatpush.bf16.msra.mxu0 %v1962
        %1978 = vmatpush.bf16.msra.mxu0 %v1961
        %1979 = vmatpush.bf16.msra.mxu0 %v1960
        %1980 = vmatpush.bf16.msra.mxu0 %v1959
        %1981 = vmatpush.bf16.msra.mxu0 %v1958
        %1982 = vmatmul.bf16.gmra.mxu0 %v1062
        %v1983 = vpop.f32.mrf.mxu0
        %v1984 = vadd.f32 0.0, %v1983
        %v1985 = vpop.f32.mrf.mxu0
        %1986 = vdwg.mxu0
        %v1987 = vpack.c.bf16 %v1185, %v1185
        %v1988 = vpack.c.bf16 %v1246, %v1246
        %v1989 = vpack.c.bf16 %v1307, %v1307
        %v1990 = vpack.c.bf16 %v1368, %v1368
        %v1991 = vpack.c.bf16 %v1493, %v1493
        %v1992 = vpack.c.bf16 %v1554, %v1554
        %v1993 = vpack.c.bf16 %v1615, %v1615
        %v1994 = vpack.c.bf16 %v1676, %v1676
        %vm1995 = vcmask 64512
        %v1997 = vsel %vm1995, %v1987, 0
        %v2000 = vsel %vm1995, %v1991, 0
        %2002 = vmatpush.bf16.xpose.msra.mxu0 0
        %2003 = vmatpush.bf16.xpose.msra.mxu0 0
        %2004 = vmatpush.bf16.xpose.msra.mxu0 0
        %2005 = vmatpush.bf16.xpose.msra.mxu0 0
        %2006 = vmatpush.bf16.xpose.msra.mxu0 0
        %2007 = vmatpush.bf16.xpose.msra.mxu0 0
        %2008 = vmatpush.bf16.xpose.msra.mxu0 0
        %2009 = vmatpush.bf16.xpose.msra.mxu0 %v2000
        %2010 = vmatmul.bf16.gmra.mxu0 %v1997
        %v2011 = vpop.f32.mrf.mxu0
        %v2012 = vadd.f32 0.0, %v2011
        %v2013 = vpop.f32.mrf.mxu0
        %2014 = vdwg.mxu0
        %v2016 = vsel %vm1995, %v1988, 0
        %v2019 = vsel %vm1995, %v1992, 0
        %2021 = vmatpush.bf16.xpose.msra.mxu0 0
        %2022 = vmatpush.bf16.xpose.msra.mxu0 0
        %2023 = vmatpush.bf16.xpose.msra.mxu0 0
        %2024 = vmatpush.bf16.xpose.msra.mxu0 0
        %2025 = vmatpush.bf16.xpose.msra.mxu0 0
        %2026 = vmatpush.bf16.xpose.msra.mxu0 0
        %2027 = vmatpush.bf16.xpose.msra.mxu0 0
        %2028 = vmatpush.bf16.xpose.msra.mxu0 %v2019
        %2029 = vmatmul.bf16.gmra.mxu0 %v2016
        %v2030 = vpop.f32.mrf.mxu0
        %v2031 = vadd.f32 0.0, %v2030
        %v2032 = vpop.f32.mrf.mxu0
        %2033 = vdwg.mxu0
        %v2035 = vsel %vm1995, %v1989, 0
        %v2038 = vsel %vm1995, %v1993, 0
        %2040 = vmatpush.bf16.xpose.msra.mxu0 0
        %2041 = vmatpush.bf16.xpose.msra.mxu0 0
        %2042 = vmatpush.bf16.xpose.msra.mxu0 0
        %2043 = vmatpush.bf16.xpose.msra.mxu0 0
        %2044 = vmatpush.bf16.xpose.msra.mxu0 0
        %2045 = vmatpush.bf16.xpose.msra.mxu0 0
        %2046 = vmatpush.bf16.xpose.msra.mxu0 0
        %2047 = vmatpush.bf16.xpose.msra.mxu0 %v2038
        %2048 = vmatmul.bf16.gmra.mxu0 %v2035
        %v2049 = vpop.f32.mrf.mxu0
        %v2050 = vadd.f32 0.0, %v2049
        %v2051 = vpop.f32.mrf.mxu0
        %2052 = vdwg.mxu0
        %v2054 = vsel %vm1995, %v1990, 0
        %v2057 = vsel %vm1995, %v1994, 0
        %2059 = vmatpush.bf16.xpose.msra.mxu0 0
        %2060 = vmatpush.bf16.xpose.msra.mxu0 0
        %2061 = vmatpush.bf16.xpose.msra.mxu0 0
        %2062 = vmatpush.bf16.xpose.msra.mxu0 0
        %2063 = vmatpush.bf16.xpose.msra.mxu0 0
        %2064 = vmatpush.bf16.xpose.msra.mxu0 0
        %2065 = vmatpush.bf16.xpose.msra.mxu0 0
        %2066 = vmatpush.bf16.xpose.msra.mxu0 %v2057
        %2067 = vmatmul.bf16.gmra.mxu0 %v2054
        %v2068 = vpop.f32.mrf.mxu0
        %v2069 = vadd.f32 0.0, %v2068
        %v2070 = vpop.f32.mrf.mxu0
        %2071 = vdwg.mxu0
        %vm2072 = vcmask 27648
        %v2073 = vsel %vm2072, %v2012, -inf
        %2074 = vmax.xlane.f32.xlu0 %v2073
        %v2075 = vpop.xlane.xlu0 %2074
        %v2076 = vsel %vm2072, %v2031, -inf
        %2077 = vmax.xlane.f32.xlu0 %v2076
        %v2078 = vpop.xlane.xlu0 %2077
        %v2079 = vsel %vm2072, %v2050, -inf
        %2080 = vmax.xlane.f32.xlu0 %v2079
        %v2081 = vpop.xlane.xlu0 %2080
        %v2082 = vsel %vm2072, %v2069, -inf
        %2083 = vmax.xlane.f32.xlu0 %v2082
        %v2084 = vpop.xlane.xlu0 %2083
        %v2085 = vsub.f32 %v2012, %v2075
        %v2086 = vsub.f32 %v2031, %v2078
        %v2087 = vsub.f32 %v2050, %v2081
        %v2088 = vsub.f32 %v2069, %v2084
        %v2089 = vmul.f32 %v2085, 1.442695
        %v2090 = vpow.pop %v2089
        %v2091 = vmul.f32 %v2086, 1.442695
        %v2092 = vpow.pop %v2091
        %v2093 = vmul.f32 %v2087, 1.442695
        %v2094 = vpow.pop %v2093
        %v2095 = vmul.f32 %v2088, 1.442695
        %v2096 = vpow.pop %v2095
        %v2097 = vsel %vm2072, %v2090, 0.0
        %2098 = vadd.xlane.f32.xlu0 %v2097
        %v2099 = vpop.xlane.xlu0 %2098
        %v2100 = vsel %vm2072, %v2092, 0.0
        %2101 = vadd.xlane.f32.xlu0 %v2100
        %v2102 = vpop.xlane.xlu0 %2101
        %v2103 = vsel %vm2072, %v2094, 0.0
        %2104 = vadd.xlane.f32.xlu0 %v2103
        %v2105 = vpop.xlane.xlu0 %2104
        %v2106 = vsel %vm2072, %v2096, 0.0
        %2107 = vadd.xlane.f32.xlu0 %v2106
        %v2108 = vpop.xlane.xlu0 %2107
        %v2109 = vrcp.pop %v2099
        %v2110 = vrcp.pop %v2102
        %v2111 = vrcp.pop %v2105
        %v2112 = vrcp.pop %v2108
        %v2113 = vmul.f32 %v2090, %v2109
        %v2114 = vmul.f32 %v2092, %v2110
        %v2115 = vmul.f32 %v2094, %v2111
        %v2116 = vmul.f32 %v2096, %v2112
        %v2117 = vpack.c.bf16 %v2113, %v2113
        %v2118 = vpack.c.bf16 %v2114, %v2114
        %v2119 = vpack.c.bf16 %v2115, %v2115
        %v2120 = vpack.c.bf16 %v2116, %v2116
        %v2121 = vpack.c.bf16 %v1801, %v1801
        %v2122 = vpack.c.bf16 %v1862, %v1862
        %v2123 = vpack.c.bf16 %v1923, %v1923
        %v2124 = vpack.c.bf16 %v1984, %v1984
        %vm2125 = vcmask 31744
        %v2127 = vsel %vm2125, %v2117, 0
        %vm2129 = vcmask 1041408
        %v2131 = vsel %vm2129, %v2121, 0
        %2133 = vmatpush.bf16.msra.mxu0 0
        %2134 = vmatpush.bf16.msra.mxu0 0
        %2135 = vmatpush.bf16.msra.mxu0 0
        %2136 = vmatpush.bf16.msra.mxu0 0
        %2137 = vmatpush.bf16.msra.mxu0 0
        %2138 = vmatpush.bf16.msra.mxu0 0
        %2139 = vmatpush.bf16.msra.mxu0 0
        %2140 = vmatpush.bf16.msra.mxu0 %v2131
        %2141 = vmatmul.bf16.gmra.mxu0 %v2127
        %v2142 = vpop.f32.mrf.mxu0
        %v2143 = vadd.f32 0.0, %v2142
        %v2144 = vpop.f32.mrf.mxu0
        %2145 = vdwg.mxu0
        %v2147 = vsel %vm2125, %v2118, 0
        %v2150 = vsel %vm2129, %v2122, 0
        %2152 = vmatpush.bf16.msra.mxu0 0
        %2153 = vmatpush.bf16.msra.mxu0 0
        %2154 = vmatpush.bf16.msra.mxu0 0
        %2155 = vmatpush.bf16.msra.mxu0 0
        %2156 = vmatpush.bf16.msra.mxu0 0
        %2157 = vmatpush.bf16.msra.mxu0 0
        %2158 = vmatpush.bf16.msra.mxu0 0
        %2159 = vmatpush.bf16.msra.mxu0 %v2150
        %2160 = vmatmul.bf16.gmra.mxu0 %v2147
        %v2161 = vpop.f32.mrf.mxu0
        %v2162 = vadd.f32 0.0, %v2161
        %v2163 = vpop.f32.mrf.mxu0
        %2164 = vdwg.mxu0
        %v2166 = vsel %vm2125, %v2119, 0
        %v2169 = vsel %vm2129, %v2123, 0
        %2171 = vmatpush.bf16.msra.mxu0 0
        %2172 = vmatpush.bf16.msra.mxu0 0
        %2173 = vmatpush.bf16.msra.mxu0 0
        %2174 = vmatpush.bf16.msra.mxu0 0
        %2175 = vmatpush.bf16.msra.mxu0 0
        %2176 = vmatpush.bf16.msra.mxu0 0
        %2177 = vmatpush.bf16.msra.mxu0 0
        %2178 = vmatpush.bf16.msra.mxu0 %v2169
        %2179 = vmatmul.bf16.gmra.mxu0 %v2166
        %v2180 = vpop.f32.mrf.mxu0
        %v2181 = vadd.f32 0.0, %v2180
        %v2182 = vpop.f32.mrf.mxu0
        %2183 = vdwg.mxu0
        %v2185 = vsel %vm2125, %v2120, 0
        %v2188 = vsel %vm2129, %v2124, 0
        %2190 = vmatpush.bf16.msra.mxu0 0
        %2191 = vmatpush.bf16.msra.mxu0 0
        %2192 = vmatpush.bf16.msra.mxu0 0
        %2193 = vmatpush.bf16.msra.mxu0 0
        %2194 = vmatpush.bf16.msra.mxu0 0
        %2195 = vmatpush.bf16.msra.mxu0 0
        %2196 = vmatpush.bf16.msra.mxu0 0
        %2197 = vmatpush.bf16.msra.mxu0 %v2188
        %2198 = vmatmul.bf16.gmra.mxu0 %v2185
        %v2199 = vpop.f32.mrf.mxu0
        %v2200 = vadd.f32 0.0, %v2199
        %v2201 = vpop.f32.mrf.mxu0
        %2202 = vdwg.mxu0
        %v2203 = vpack.c.bf16 %v2143, %v2143
        %v2204 = vpack.c.bf16 %v2162, %v2162
        %v2205 = vpack.c.bf16 %v2181, %v2181
        %v2206 = vpack.c.bf16 %v2200, %v2200
        %v2207 = vld [vmem:[%s845] sm:$0xf]
        %v2208 = vld [vmem:[%s845 + $0x4] sm:$0xf]
        %v2209 = vld [vmem:[%s845 + $0x8] sm:$0xf]
        %v2210 = vld [vmem:[%s845 + $0xc] sm:$0xf]
        %v2212 = vsel %vm1995, %v2203, 0
        %v2215 = vsel %vm1029, %v2207, 0
        %2217 = vmatpush.bf16.msra.mxu0 0
        %2218 = vmatpush.bf16.msra.mxu0 0
        %2219 = vmatpush.bf16.msra.mxu0 0
        %2220 = vmatpush.bf16.msra.mxu0 0
        %2221 = vmatpush.bf16.msra.mxu0 0
        %2222 = vmatpush.bf16.msra.mxu0 0
        %2223 = vmatpush.bf16.msra.mxu0 0
        %2224 = vmatpush.bf16.msra.mxu0 %v2215
        %2225 = vmatmul.bf16.gmra.mxu0 %v2212
        %v2226 = vpop.f32.mrf.mxu0
        %v2227 = vadd.f32 0.0, %v2226
        %v2228 = vpop.f32.mrf.mxu0
        %2229 = vdwg.mxu0
        %v2231 = vsel %vm1995, %v2204, 0
        %v2234 = vsel %vm1029, %v2208, 0
        %2236 = vmatpush.bf16.msra.mxu0 0
        %2237 = vmatpush.bf16.msra.mxu0 0
        %2238 = vmatpush.bf16.msra.mxu0 0
        %2239 = vmatpush.bf16.msra.mxu0 0
        %2240 = vmatpush.bf16.msra.mxu0 0
        %2241 = vmatpush.bf16.msra.mxu0 0
        %2242 = vmatpush.bf16.msra.mxu0 0
        %2243 = vmatpush.bf16.msra.mxu0 %v2234
        %2244 = vmatmul.bf16.gmra.mxu0 %v2231
        %v2245 = vpop.f32.mrf.mxu0
        %v2246 = vadd.f32 0.0, %v2245
        %v2247 = vpop.f32.mrf.mxu0
        %2248 = vdwg.mxu0
        %v2250 = vsel %vm1995, %v2205, 0
        %v2253 = vsel %vm1029, %v2209, 0
        %2255 = vmatpush.bf16.msra.mxu0 0
        %2256 = vmatpush.bf16.msra.mxu0 0
        %2257 = vmatpush.bf16.msra.mxu0 0
        %2258 = vmatpush.bf16.msra.mxu0 0
        %2259 = vmatpush.bf16.msra.mxu0 0
        %2260 = vmatpush.bf16.msra.mxu0 0
        %2261 = vmatpush.bf16.msra.mxu0 0
        %2262 = vmatpush.bf16.msra.mxu0 %v2253
        %2263 = vmatmul.bf16.gmra.mxu0 %v2250
        %v2264 = vpop.f32.mrf.mxu0
        %v2265 = vadd.f32 0.0, %v2264
        %v2266 = vpop.f32.mrf.mxu0
        %2267 = vdwg.mxu0
        %v2269 = vsel %vm1995, %v2206, 0
        %v2272 = vsel %vm1029, %v2210, 0
        %2274 = vmatpush.bf16.msra.mxu0 0
        %2275 = vmatpush.bf16.msra.mxu0 0
        %2276 = vmatpush.bf16.msra.mxu0 0
        %2277 = vmatpush.bf16.msra.mxu0 0
        %2278 = vmatpush.bf16.msra.mxu0 0
        %2279 = vmatpush.bf16.msra.mxu0 0
        %2280 = vmatpush.bf16.msra.mxu0 0
        %2281 = vmatpush.bf16.msra.mxu0 %v2272
        %2282 = vmatmul.bf16.gmra.mxu0 %v2269
        %v2283 = vpop.f32.mrf.mxu0
        %v2284 = vadd.f32 0.0, %v2283
        %v2285 = vpop.f32.mrf.mxu0
        %2286 = vdwg.mxu0
        %v2287 = vsel %vm1029, %v2227, 0.0
        %v2288 = vsel %vm1029, %v2246, 0.0
        %v2289 = vadd.f32 %v2287, %v2288
        %v2290 = vsel %vm1029, %v2265, 0.0
        %v2291 = vadd.f32 %v2289, %v2290
        %v2292 = vsel %vm1029, %v2284, 0.0
        %v2293 = vadd.f32 %v2291, %v2292
        %v2294 = vadd.f32 %v1026, %v2293
        %v2295 = vld [vmem:[%s848] sm:$0x1]
        %v2296 = vld [vmem:[%s851] sm:$0x1]
        %v2297 = vsel %vm1029, %v2294, 0.0
        %2298 = vadd.xlane.f32.xlu0 %v2297
        %v2299 = vpop.xlane.xlu0 %2298
        %v2300 = vmul.f32 %v2299, 0.03125
        %v2301 = vmul.f32 %v2294, %v2294
        %v2302 = vsel %vm1029, %v2301, 0.0
        %2303 = vadd.xlane.f32.xlu0 %v2302
        %v2304 = vpop.xlane.xlu0 %2303
        %v2305 = vmul.f32 %v2304, 0.03125
        %v2306 = vmul.f32 %v2300, %v2300
        %v2307 = vsub.f32 %v2305, %v2306
        %v2308 = vsub.f32 %v2294, %v2300
        %v2309 = vadd.f32 %v2307, 1e-05
        %v2310 = vrsqrt.pop %v2309
        %v2311 = vmul.f32 %v2310, %v2309
        %v2312 = vmul.f32 %v2311, %v2310
        %v2313 = vmul.f32 0.5, %v2312
        %v2314 = vsub.f32 1.5, %v2313
        %v2315 = vmul.f32 %v2310, %v2314
        %vm2316 = vweird.f32 %v2309
        %vm2317 = vweird.f32 %v2310
        %vm2318 = vmor %vm2316, %vm2317
        %v2319 = vsel %vm2318, %v2310, %v2315
        %v2320 = vmul.f32 %v2308, %v2319
        %v2322 = vperm.slane %v2295, 0
        %v2324 = vmul.f32 %v2320, %v2322
        %v2326 = vperm.slane %v2296, 0
        %v2328 = vadd.f32 %v2324, %v2326
        %v2329 = vpack.c.bf16 %v2328, %v2328
        %v2330 = vld [vmem:[%s856] sm:$0xf]
        %v2331 = vld [vmem:[%s856 + $0x4] sm:$0xf]
        %v2332 = vld [vmem:[%s856 + $0x8] sm:$0xf]
        %v2333 = vld [vmem:[%s856 + $0xc] sm:$0xf]
        %v2334 = vld [vmem:[%s856 + $0x10] sm:$0xf]
        %v2335 = vld [vmem:[%s856 + $0x14] sm:$0xf]
        %v2336 = vld [vmem:[%s856 + $0x18] sm:$0xf]
        %v2337 = vld [vmem:[%s856 + $0x1c] sm:$0xf]
        %v2338 = vld [vmem:[%s856 + $0x20] sm:$0xf]
        %v2339 = vld [vmem:[%s856 + $0x24] sm:$0xf]
        %v2340 = vld [vmem:[%s856 + $0x28] sm:$0xf]
        %v2341 = vld [vmem:[%s856 + $0x2c] sm:$0xf]
        %v2342 = vld [vmem:[%s856 + $0x30] sm:$0xf]
        %v2343 = vld [vmem:[%s856 + $0x34] sm:$0xf]
        %v2344 = vld [vmem:[%s856 + $0x38] sm:$0xf]
        %v2345 = vld [vmem:[%s856 + $0x3c] sm:$0xf]
        %v2346 = vld [vmem:[%s859] sm:$0x1]
        %v2348 = vperm.slane %v2346, 0
        %v2366 = vunpack.c.l.b16 %v2330
        %v2367 = vunpack.c.l.b16 %v2331
        %v2368 = vunpack.c.l.b16 %v2332
        %v2369 = vunpack.c.l.b16 %v2333
        %v2370 = vunpack.c.l.b16 %v2334
        %v2371 = vunpack.c.l.b16 %v2335
        %v2372 = vunpack.c.l.b16 %v2336
        %v2373 = vunpack.c.l.b16 %v2337
        %v2374 = vunpack.c.l.b16 %v2338
        %v2375 = vunpack.c.l.b16 %v2339
        %v2376 = vunpack.c.l.b16 %v2340
        %v2377 = vunpack.c.l.b16 %v2341
        %v2378 = vunpack.c.l.b16 %v2342
        %v2379 = vunpack.c.l.b16 %v2343
        %v2380 = vunpack.c.l.b16 %v2344
        %v2381 = vunpack.c.l.b16 %v2345
        %v2382 = vpack.c.b16 %v2367, %v2366
        %v2383 = vpack.c.b16 %v2369, %v2368
        %v2384 = vpack.c.b16 %v2371, %v2370
        %v2385 = vpack.c.b16 %v2373, %v2372
        %v2386 = vpack.c.b16 %v2375, %v2374
        %v2387 = vpack.c.b16 %v2377, %v2376
        %v2388 = vpack.c.b16 %v2379, %v2378
        %v2389 = vpack.c.b16 %v2381, %v2380
        %2398 = vmatpush.bf16.msra.mxu0 %v2389
        %2399 = vmatpush.bf16.msra.mxu0 %v2388
        %2400 = vmatpush.bf16.msra.mxu0 %v2387
        %2401 = vmatpush.bf16.msra.mxu0 %v2386
        %2402 = vmatpush.bf16.msra.mxu0 %v2385
        %2403 = vmatpush.bf16.msra.mxu0 %v2384
        %2404 = vmatpush.bf16.msra.mxu0 %v2383
        %2405 = vmatpush.bf16.msra.mxu0 %v2382
        %2406 = vmatmul.bf16.gmra.mxu0 %v2329
        %v2407 = vpop.f32.mrf.mxu0
        %v2408 = vadd.f32 %v2348, %v2407
        %v2409 = vpop.f32.mrf.mxu0
        %2410 = vdwg.mxu0
        %v2411 = vmul.f32 %v2408, 0.5
        %v2412 = vmul.f32 %v2408, 0.70710677
        %v2413 = vmul.f32 %v2412, %v2412
        %v2414 = vmin.f32 16.0, %v2413
        %v2415 = vmul.f32 %v2414, 2.1237322e-06
        %v2416 = vadd.f32 %v2415, 0.00028619796
        %v2417 = vmul.f32 %v2414, %v2416
        %v2418 = vadd.f32 %v2417, 0.0036580483
        %v2419 = vmul.f32 %v2414, %v2418
        %v2420 = vadd.f32 %v2419, 0.05243302
        %v2421 = vmul.f32 %v2414, %v2420
        %v2422 = vadd.f32 %v2421, 0.18741608
        %v2423 = vmul.f32 %v2414, %v2422
        %v2424 = vadd.f32 %v2423, 1.1283791
        %v2425 = vmul.f32 %v2412, %v2424
        %v2426 = vmul.f32 %v2414, 3.8918573e-05
        %v2427 = vadd.f32 %v2426, 0.001143296
        %v2428 = vmul.f32 %v2414, %v2427
        %v2429 = vadd.f32 %v2428, 0.014752088
        %v2430 = vmul.f32 %v2414, %v2429
        %v2431 = vadd.f32 %v2430, 0.112945676
        %v2432 = vmul.f32 %v2414, %v2431
        %v2433 = vadd.f32 %v2432, 0.4994258
        %v2434 = vmul.f32 %v2414, %v2433
        %v2435 = vadd.f32 %v2434, 1.0
        %v2436 = vrcp.pop %v2435
        %v2437 = vmul.f32 %v2435, %v2436
        %v2438 = vsub.f32 1.0, %v2437
        %v2439 = vmul.f32 %v2436, %v2438
        %v2440 = vadd.f32 %v2436, %v2439
        %vm2441 = vweird.f32 %v2435
        %vm2442 = vweird.f32 %v2436
        %vm2443 = vmor %vm2441, %vm2442
        %v2444 = vsel %vm2443, %v2436, %v2440
        %v2445 = vand.u32 2147483647, %v2435
        %vm2446 = vcmp.eq.f32.partialorder %v2445, 8.507059e+37
        %v2447 = vand.u32 %v2435, 2147483648
        %v2448 = vor.u32 1.1754944e-38, %v2447
        %v2449 = vsel %vm2446, %v2448, %v2444
        %v2450 = vmul.f32 %v2425, %v2449
        %v2451 = vmin.f32 %v2450, 1.0
        %v2452 = vmax.f32 %v2451, -1.0
        %v2453 = vadd.f32 %v2452, 1.0
        %v2454 = vmul.f32 %v2411, %v2453
        %v2455 = vpack.c.bf16 %v2454, %v2454
        %v2456 = vld [vmem:[%s864] sm:$0xf]
        %v2457 = vld [vmem:[%s864 + $0x4] sm:$0xf]
        %v2458 = vld [vmem:[%s864 + $0x8] sm:$0xf]
        %v2459 = vld [vmem:[%s864 + $0xc] sm:$0xf]
        %v2460 = vld [vmem:[%s864 + $0x10] sm:$0xf]
        %v2461 = vld [vmem:[%s864 + $0x14] sm:$0xf]
        %v2462 = vld [vmem:[%s864 + $0x18] sm:$0xf]
        %v2463 = vld [vmem:[%s864 + $0x1c] sm:$0xf]
        %v2464 = vld [vmem:[%s864 + $0x20] sm:$0xf]
        %v2465 = vld [vmem:[%s864 + $0x24] sm:$0xf]
        %v2466 = vld [vmem:[%s864 + $0x28] sm:$0xf]
        %v2467 = vld [vmem:[%s864 + $0x2c] sm:$0xf]
        %v2468 = vld [vmem:[%s864 + $0x30] sm:$0xf]
        %v2469 = vld [vmem:[%s864 + $0x34] sm:$0xf]
        %v2470 = vld [vmem:[%s864 + $0x38] sm:$0xf]
        %v2471 = vld [vmem:[%s864 + $0x3c] sm:$0xf]
        %v2472 = vld [vmem:[%s867] sm:$0x1]
        %v2474 = vperm.slane %v2472, 0
        %v2492 = vunpack.c.l.b16 %v2456
        %v2493 = vunpack.c.l.b16 %v2457
        %v2494 = vunpack.c.l.b16 %v2458
        %v2495 = vunpack.c.l.b16 %v2459
        %v2496 = vunpack.c.l.b16 %v2460
        %v2497 = vunpack.c.l.b16 %v2461
        %v2498 = vunpack.c.l.b16 %v2462
        %v2499 = vunpack.c.l.b16 %v2463
        %v2500 = vunpack.c.l.b16 %v2464
        %v2501 = vunpack.c.l.b16 %v2465
        %v2502 = vunpack.c.l.b16 %v2466
        %v2503 = vunpack.c.l.b16 %v2467
        %v2504 = vunpack.c.l.b16 %v2468
        %v2505 = vunpack.c.l.b16 %v2469
        %v2506 = vunpack.c.l.b16 %v2470
        %v2507 = vunpack.c.l.b16 %v2471
        %v2508 = vpack.c.b16 %v2493, %v2492
        %v2509 = vpack.c.b16 %v2495, %v2494
        %v2510 = vpack.c.b16 %v2497, %v2496
        %v2511 = vpack.c.b16 %v2499, %v2498
        %v2512 = vpack.c.b16 %v2501, %v2500
        %v2513 = vpack.c.b16 %v2503, %v2502
        %v2514 = vpack.c.b16 %v2505, %v2504
        %v2515 = vpack.c.b16 %v2507, %v2506
        %2524 = vmatpush.bf16.msra.mxu0 %v2515
        %2525 = vmatpush.bf16.msra.mxu0 %v2514
        %2526 = vmatpush.bf16.msra.mxu0 %v2513
        %2527 = vmatpush.bf16.msra.mxu0 %v2512
        %2528 = vmatpush.bf16.msra.mxu0 %v2511
        %2529 = vmatpush.bf16.msra.mxu0 %v2510
        %2530 = vmatpush.bf16.msra.mxu0 %v2509
        %2531 = vmatpush.bf16.msra.mxu0 %v2508
        %2532 = vmatmul.bf16.gmra.mxu0 %v2455
        %v2533 = vpop.f32.mrf.mxu0
        %v2534 = vadd.f32 %v2474, %v2533
        %v2535 = vpop.f32.mrf.mxu0
        %2536 = vdwg.mxu0
        %v2537 = vadd.f32 %v2294, %v2534
        %2538 = vst [vmem:[#allocation2] sm:$0xf] %v2537
        %p2539 = scmp.eq.s32.totalorder %s40, 1
        // Predicated region
        $region109: #{simple_vit_forward.1} parent=103 // pred_check
          %p2540 = pneg %p2539
        $region110: #{simple_vit_forward.1} parent=103 // pred_check_branch
          %2542 = sbr.rel (%p2540) target = $region112
        $region111: #{simple_vit_forward.1} parent=103 // pred_region
          %v2543 = vld [vmem:[%s19] sm:$0x1]
          %v2544 = vld [vmem:[%s20] sm:$0x1]
          %v2545 = vsel %vm1029, %v2537, 0.0
          %2546 = vadd.xlane.f32.xlu0 %v2545
          %v2547 = vpop.xlane.xlu0 %2546
          %v2548 = vmul.f32 %v2547, 0.03125
          %v2549 = vmul.f32 %v2537, %v2537
          %v2550 = vsel %vm1029, %v2549, 0.0
          %2551 = vadd.xlane.f32.xlu0 %v2550
          %v2552 = vpop.xlane.xlu0 %2551
          %v2553 = vmul.f32 %v2552, 0.03125
          %v2554 = vmul.f32 %v2548, %v2548
          %v2555 = vsub.f32 %v2553, %v2554
          %v2556 = vsub.f32 %v2537, %v2548
          %v2557 = vadd.f32 %v2555, 1e-05
          %v2558 = vrsqrt.pop %v2557
          %v2559 = vmul.f32 %v2558, %v2557
          %v2560 = vmul.f32 %v2559, %v2558
          %v2561 = vmul.f32 0.5, %v2560
          %v2562 = vsub.f32 1.5, %v2561
          %v2563 = vmul.f32 %v2558, %v2562
          %vm2564 = vweird.f32 %v2557
          %vm2565 = vweird.f32 %v2558
          %vm2566 = vmor %vm2564, %vm2565
          %v2567 = vsel %vm2566, %v2558, %v2563
          %v2568 = vmul.f32 %v2556, %v2567
          %v2570 = vperm.slane %v2543, 0
          %v2572 = vmul.f32 %v2568, %v2570
          %v2574 = vperm.slane %v2544, 0
          %v2576 = vadd.f32 %v2572, %v2574
          %2577 = vst [vmem:[%s815] sm:$0xf] %v2576
        $region112: #{simple_vit_forward.1} parent=103 // pred_fallthru
          _
        %s2578 = sand.u32 %s561, 1
        %s2579 = scalar_lea.sflag [#allocation4], %s2578
        %s2580 = sand.u32 %s561, 1
        %s2581 = smul.addr %s2580, 4
        %s2582 = scalar_lea.vmem [#allocation3], %s2581
        // Predicated region
        $region113: #{simple_vit_forward.1} parent=103 // pred_check
          %p2583 = pneg %p571
        $region114: #{simple_vit_forward.1} parent=103 // pred_check_branch
          %2585 = sbr.rel (%p2583) target = $region116
        $region115: #{simple_vit_forward.1} parent=103 // pred_region
          %2587 = vsyncadd %s2579, 0
          %s2588 = smul.addr %s39, 4
          %s2589 = scalar_lea.hbm %s21, %s2588
          %s2591 = sshll.u32 %s2582, 4
          %s2592 = int_to_ptr.vmem [resolvable:$true] %s2591
          %s2593 = sshll.u32 %s2589, 4
          %s2594 = int_to_ptr.hbm [resolvable:$true] %s2593
          %2596 = dma.vmem_to_hbm [thread:$0]  %s2592, 64, %s2594, %s2579
        $region116: #{simple_vit_forward.1} parent=103 // pred_fallthru
          _
      $region104: #{simple_vit_forward.1} parent=5 // pred_fallthru
        _
      %p2597 = scmp.le.s32.totalorder 2, %s30
      // Predicated region
      $region117: #{simple_vit_forward.1} parent=5 // pred_check
        %p2598 = pneg %p2597
      $region118: #{simple_vit_forward.1} parent=5 // pred_check_branch
        %2600 = sbr.rel (%p2598) target = $region120
      $region119: #{simple_vit_forward.1} parent=5 // pred_region
        %s2601 = ssub.s32 %s30, 2
        // Predicated region
        $region121: #{simple_vit_forward.1} parent=119 // pred_check
          %p2602 = pneg %p577
        $region122: #{simple_vit_forward.1} parent=119 // pred_check_branch
          %2604 = sbr.rel (%p2602) target = $region124
        $region123: #{simple_vit_forward.1} parent=119 // pred_region
          %s2605 = sand.u32 %s562, 1
          %s2606 = scalar_lea.sflag [#allocation4], %s2605
          %s2607 = sand.u32 %s562, 1
          %s2608 = smul.addr %s2607, 4
          %s2609 = scalar_lea.vmem [#allocation3], %s2608
          %2611 = dma.done %s2606, 64
        $region124: #{simple_vit_forward.1} parent=119 // pred_fallthru
          _
      $region120: #{simple_vit_forward.1} parent=5 // pred_fallthru
        _
    $region6: #{simple_vit_forward.1} parent=1 // loop_footer
      %s34 = sadd.s32 1, %s30
    $region7: #{simple_vit_forward.1} parent=1 // loop_footer_branch
      %29 = sbr.rel target = $region3
    $region8: #{simple_vit_forward.1} parent=1 // loop_exit
      _
    %2612 = vsyncpa [#allocation4], 1
    %s2613 = scalar_lea.sflag [#allocation4], 1
    %2614 = vsyncpa %s2613, 1

</llo_original>
